<compile_context>
chip_gen: v7x
topology: tpu7x:2x2x1
jax: 0.10.0
libtpu: 0.0.40
codegen_flags: <defaults>
</compile_context>

<pallas_src>
import functools

import jax
import jax.numpy as jnp
import numpy as np
from jax.experimental import pallas as pl
from jax.experimental.pallas import tpu as pltpu

PAD = 3  # max dilation used by the branches (branch4: dilation=3)


# ------------------------------ Pallas kernel ------------------------------ #

def _mssr_kernel(x_ref, g_ref, k_ref, ob_ref, out_ref, xpad_ref, *, H, W, C, r):
    """One batch element per grid step; everything in lane-dense (rows, W*C).

      x_ref    : (H, W*C)             input image (channels fastest, in lanes)
      g_ref    : (2*PAD+1, W*C, W*C)  banded depthwise+pointwise+merge weights
      k_ref    : (r, W*C, Wo*C)       banded stride-r depthwise + final-1x1
      ob_ref   : (1, Wo*C)            all biases, folded to the output
      out_ref  : (Ho, Wo*C)           lane-dense output block
      xpad_ref : (H+2*PAD, W*C)       VMEM scratch, row-padded copy of the input
    """
    Ho = H // r
    Wo = W // r
    WC = W * C

    # Stage the row-padded input (column padding lives in zeros of g_ref).
    # Rewritten every grid step: cheap (2*PAD zero rows + H data rows) and safe
    # even if the batch axis is split across TensorCores.
    xpad_ref[0:PAD, :] = jnp.zeros((PAD, WC), jnp.float32)
    xpad_ref[PAD + H:PAD + H + PAD, :] = jnp.zeros((PAD, WC), jnp.float32)
    xpad_ref[PAD:PAD + H, :] = x_ref[...]

    acc = jnp.zeros((Ho, Wo * C), jnp.float32)
    for ri in range(r):                       # output-row phase: h = r*ho + ri
        # multiscale + merge for these rows: 7 banded MXU matmuls (K = W*C)
        ms = jnp.zeros((Ho, WC), jnp.float32)
        for oy in range(2 * PAD + 1):         # row offset dy = oy - PAD
            rows = xpad_ref[pl.ds(oy + ri, Ho, r), :]          # (Ho, W*C)
            ms = ms + jnp.dot(rows, g_ref[oy],
                              preferred_element_type=jnp.float32)
        # residual add (all biases folded into ob_ref)
        res = x_ref[pl.ds(ri, Ho, r), :] + ms                  # (Ho, W*C)
        # fused stride-r depthwise + final 1x1, valid output columns only
        acc = acc + jnp.dot(res, k_ref[ri],
                            preferred_element_type=jnp.float32)

    out_ref[...] = (acc + ob_ref[...]).astype(out_ref.dtype)


# ------------------------------ wrapper ------------------------------------ #

def mssr_forward(x_nhwc, kp, r):
    B, H, W, C = x_nhwc.shape
    assert H % r == 0 and W % r == 0 and C % 4 == 0
    Ho, Wo = H // r, W // r

    x2 = x_nhwc.reshape(B, H, W * C)          # free row-major reshape, lane-dense

    out2 = pl.pallas_call(
        functools.partial(_mssr_kernel, H=H, W=W, C=C, r=r),
        out_shape=jax.ShapeDtypeStruct((B, Ho, Wo * C), jnp.float32),
        grid=(B,),
        in_specs=[
            pl.BlockSpec((None, H, W * C), lambda b: (b, 0, 0)),             # x
            pl.BlockSpec((2 * PAD + 1, W * C, W * C), lambda b: (0, 0, 0)),  # G
            pl.BlockSpec((r, W * C, Wo * C), lambda b: (0, 0, 0)),           # K
            pl.BlockSpec((1, Wo * C), lambda b: (0, 0)),                     # bias
        ],
        out_specs=pl.BlockSpec((None, Ho, Wo * C), lambda b: (b, 0, 0)),
        scratch_shapes=[pltpu.VMEM((H + 2 * PAD, W * C), jnp.float32)],
        compiler_params=pltpu.CompilerParams(
            dimension_semantics=("parallel",)),  # batch elements independent
        # TODO(synk): grid=(B, H_tiles) + vmem_limit_bytes for production shapes.
    )(x2, kp['G'], kp['K'], kp['outb'])

    return out2.reshape(B, Ho, Wo, C)         # free row-major reshape (NHWC)


# ----------------------- deterministic parameter setup --------------------- #

def init_torch_params(key, C, R, r):
    """Deterministic parameters in PyTorch OIHW layout (synthetic init)."""
    names_shapes = [
        ('b1_dw_w', (C, 1, 1, 1)), ('b1_dw_b', (C,)),
        ('b2_dw_w', (C, 1, 3, 3)), ('b2_dw_b', (C,)),
        ('b3_dw_w', (C, 1, 3, 3)), ('b3_dw_b', (C,)),
        ('b4_dw_w', (C, 1, 3, 3)), ('b4_dw_b', (C,)),
        ('b1_pw_w', (R, C, 1, 1)), ('b1_pw_b', (R,)),
        ('b2_pw_w', (R, C, 1, 1)), ('b2_pw_b', (R,)),
        ('b3_pw_w', (R, C, 1, 1)), ('b3_pw_b', (R,)),
        ('b4_pw_w', (R, C, 1, 1)), ('b4_pw_b', (R,)),
        ('merge_w', (C, 4 * R, 1, 1)), ('merge_b', (C,)),
        ('dw_w', (C, 1, r, r)), ('dw_b', (C,)),
        ('final_w', (C, C, 1, 1)), ('final_b', (C,)),
    ]
    keys = jax.random.split(key, len(names_shapes))
    return {n: 0.2 * jax.random.normal(k, s, dtype=jnp.float32)
            for (n, s), k in zip(names_shapes, keys)}


def torch_to_kernel_params(tp, C, R, r, W):
    """Host-side refactor of the OIHW PyTorch params into banded, lane-dense
    weight matrices (all biases folded into a single output bias)."""
    f = lambda a: np.asarray(a, dtype=np.float32)
    Wo = W // r

    # depthwise weights / biases
    dw1w = f(tp['b1_dw_w']).reshape(C)
    dw1b = f(tp['b1_dw_b'])
    dw3w = np.stack([f(tp[f'b{i}_dw_w']).reshape(C, 3, 3).transpose(1, 2, 0)
                     for i in (2, 3, 4)])                     # (3, ky, kx, C)
    dw3b = np.stack([f(tp[f'b{i}_dw_b']) for i in (2, 3, 4)])  # (3, C)

    # fold per-branch 1x1 pointwise into merge:  BW_i = pw_i @ merge_slice_i
    mw = f(tp['merge_w']).reshape(C, 4 * R).T                 # (4R, C) in->out
    msbias = f(tp['merge_b']).copy()
    BW = []
    for bi, i in enumerate((1, 2, 3, 4)):
        pw = f(tp[f'b{i}_pw_w']).reshape(R, C).T              # (C, R) in->out
        pb = f(tp[f'b{i}_pw_b'])
        msl = mw[bi * R:(bi + 1) * R, :]                      # (R, C)
        BW.append(pw @ msl)                                   # (C, C)
        msbias = msbias + pb @ msl
    # fold depthwise biases through the pointwise+merge weights
    msbias = msbias + dw1b @ BW[0]
    for bi in range(3):
        msbias = msbias + dw3b[bi] @ BW[bi + 1]

    # banded multiscale + merge weights: G[oy] maps lane (wa*C+c) -> (w*C+c')
    G = np.zeros((2 * PAD + 1, W * C, W * C), np.float32)
    blk1 = dw1w[:, None] * BW[0]                              # branch1 (1x1 dw)
    for w in range(W):
        G[PAD, w * C:(w + 1) * C, w * C:(w + 1) * C] += blk1
    for bi, d in enumerate((1, 2, 3)):                        # 3x3 dw, dil d
        for ky in range(3):
            oy = PAD + (ky - 1) * d
            for kx in range(3):
                dx = (kx - 1) * d
                blk = dw3w[bi, ky, kx][:, None] * BW[bi + 1]
                for w in range(W):
                    wa = w + dx
                    if 0 <= wa < W:                           # column padding = zeros in G
                        G[oy, wa * C:(wa + 1) * C, w * C:(w + 1) * C] += blk

    # fused stride-r depthwise + final 1x1: K[ri] maps (wa*C+c) -> (wo*C+c'')
    dwrw = f(tp['dw_w']).reshape(C, r, r).transpose(1, 2, 0)  # (ri, rj, C)
    dwrb = f(tp['dw_b'])
    fw = f(tp['final_w']).reshape(C, C).T                     # (Cin, Cout)
    fb = f(tp['final_b'])
    K = np.zeros((r, W * C, Wo * C), np.float32)
    for ri in range(r):
        for rj in range(r):
            blk = dwrw[ri, rj][:, None] * fw                  # (C, C)
            for wo in range(Wo):
                wa = wo * r + rj
                K[ri, wa * C:(wa + 1) * C, wo * C:(wo + 1) * C] += blk

    # every spatially-constant bias folded to the output
    S = dwrw.sum(axis=(0, 1))                                 # (C,)
    outbias = fb + dwrb @ fw + (msbias * S) @ fw              # (C,)
    outb = np.tile(outbias, Wo)[None, :]                      # (1, Wo*C)

    return dict(G=jnp.asarray(G), K=jnp.asarray(K), outb=jnp.asarray(outb))


# ----------------------------- pure-JAX reference --------------------------- #

def _conv2d_ref(x, w, b, stride=1, padding=0, dilation=1, groups=1):
    out = jax.lax.conv_general_dilated(
        x, w, (stride, stride),
        ((padding, padding), (padding, padding)),
        rhs_dilation=(dilation, dilation),
        dimension_numbers=('NCHW', 'OIHW', 'NCHW'),
        feature_group_count=groups)
    return out + b[None, :, None, None]


def mssr_ref(x, tp, r):
    C = x.shape[1]
    b1 = _conv2d_ref(_conv2d_ref(x, tp['b1_dw_w'], tp['b1_dw_b'], groups=C),
                     tp['b1_pw_w'], tp['b1_pw_b'])
    b2 = _conv2d_ref(_conv2d_ref(x, tp['b2_dw_w'], tp['b2_dw_b'], padding=1, dilation=1, groups=C),
                     tp['b2_pw_w'], tp['b2_pw_b'])
    b3 = _conv2d_ref(_conv2d_ref(x, tp['b3_dw_w'], tp['b3_dw_b'], padding=2, dilation=2, groups=C),
                     tp['b3_pw_w'], tp['b3_pw_b'])
    b4 = _conv2d_ref(_conv2d_ref(x, tp['b4_dw_w'], tp['b4_dw_b'], padding=3, dilation=3, groups=C),
                     tp['b4_pw_w'], tp['b4_pw_b'])
    ms = _conv2d_ref(jnp.concatenate([b1, b2, b3, b4], axis=1), tp['merge_w'], tp['merge_b'])
    residual = x + ms
    reduced = _conv2d_ref(residual, tp['dw_w'], tp['dw_b'], stride=r, groups=C)
    return _conv2d_ref(reduced, tp['final_w'], tp['final_b'])


# --------------------------------- main ------------------------------------ #

if __name__ == "__main__":
    B, C, H, W, r = 2, 8, 16, 16, 2            # channels, spatial_reduction = r
    R = C // 4

    key = jax.random.PRNGKey(0)
    kx_, kp_ = jax.random.split(key)
    x_nchw = jax.random.normal(kx_, (B, C, H, W), dtype=jnp.float32)

    tparams = init_torch_params(kp_, C, R, r)
    kparams = torch_to_kernel_params(tparams, C, R, r, W)

    x_nhwc = jnp.transpose(x_nchw, (0, 2, 3, 1))
    out_nhwc = jax.block_until_ready(mssr_forward(x_nhwc, kparams, r))

    out_nchw = jnp.transpose(out_nhwc, (0, 3, 1, 2))
    ref_nchw = mssr_ref(x_nchw, tparams, r)

    assert out_nchw.shape == ref_nchw.shape == (B, C, H // r, W // r)
    max_err = float(jnp.max(jnp.abs(out_nchw - ref_nchw)))
    assert max_err < 1e-4, f"mismatch vs reference: max abs err = {max_err}"
    print("KERNEL_OK")
</pallas_src>

<mosaic_0001>
module attributes {stable_mosaic.version = 11 : i64} {
  func.func @_mssr_kernel(%arg0: i32, %arg1: memref<1x16x128xf32, #tpu.memory_space<vmem>>, %arg2: memref<7x128x128xf32, #tpu.memory_space<vmem>>, %arg3: memref<2x128x64xf32, #tpu.memory_space<vmem>>, %arg4: memref<1x64xf32, #tpu.memory_space<vmem>>, %arg5: memref<1x8x64xf32, #tpu.memory_space<vmem>>, %arg6: memref<22x128xf32, #tpu.memory_space<vmem>>) attributes {dimension_semantics = [#tpu.dimension_semantics<parallel>], iteration_bounds = array<i64: 2>, scalar_prefetch = 0 : i64, scratch_operands = 1 : i64, tpu.core_type = #tpu.core_type<tc>, window_params = [{transform_indices = @transform_0, window_bounds = array<i64: 1, 16, 128>}, {pipeline_mode = #tpu.pipeline_mode<synchronous>, transform_indices = @transform_1, window_bounds = array<i64: 7, 128, 128>}, {pipeline_mode = #tpu.pipeline_mode<synchronous>, transform_indices = @transform_2, window_bounds = array<i64: 2, 128, 64>}, {pipeline_mode = #tpu.pipeline_mode<synchronous>, transform_indices = @transform_3, window_bounds = array<i64: 1, 64>}, {transform_indices = @transform_4, window_bounds = array<i64: 1, 8, 64>}]} {
    %cst = arith.constant 0.000000e+00 : f32
    %0 = vector.broadcast %cst : f32 to vector<3x128xf32>
    %c0 = arith.constant 0 : index
    %c0_0 = arith.constant 0 : index
    %1 = vector.load %arg6[%c0, %c0_0] : memref<22x128xf32, #tpu.memory_space<vmem>>, vector<3x128xf32>
    tpu.vector_store %arg6[%c0, %c0_0], %0 {strides = array<i32>} : memref<22x128xf32, #tpu.memory_space<vmem>>, vector<3x128xf32>,
    %cst_1 = arith.constant 0.000000e+00 : f32
    %2 = vector.broadcast %cst_1 : f32 to vector<3x128xf32>
    %c19 = arith.constant 19 : index
    %c0_2 = arith.constant 0 : index
    %3 = vector.load %arg6[%c19, %c0_2] : memref<22x128xf32, #tpu.memory_space<vmem>>, vector<3x128xf32>
    tpu.vector_store %arg6[%c19, %c0_2], %2 {strides = array<i32>} : memref<22x128xf32, #tpu.memory_space<vmem>>, vector<3x128xf32>,
    %c0_3 = arith.constant 0 : index
    %c0_4 = arith.constant 0 : index
    %c0_5 = arith.constant 0 : index
    %4 = vector.load %arg1[%c0_3, %c0_4, %c0_5] : memref<1x16x128xf32, #tpu.memory_space<vmem>>, vector<1x16x128xf32>
    %5 = vector.shape_cast %4 : vector<1x16x128xf32> to vector<16x128xf32>
    %c3 = arith.constant 3 : index
    %c0_6 = arith.constant 0 : index
    %6 = vector.load %arg6[%c3, %c0_6] : memref<22x128xf32, #tpu.memory_space<vmem>>, vector<16x128xf32>
    tpu.vector_store %arg6[%c3, %c0_6], %5 {strides = array<i32>} : memref<22x128xf32, #tpu.memory_space<vmem>>, vector<16x128xf32>,
    %cst_7 = arith.constant 0.000000e+00 : f32
    %7 = vector.broadcast %cst_7 : f32 to vector<8x64xf32>
    %cst_8 = arith.constant 0.000000e+00 : f32
    %8 = vector.broadcast %cst_8 : f32 to vector<8x128xf32>
    %c0_9 = arith.constant 0 : index
    %c0_10 = arith.constant 0 : index
    %9 = tpu.strided_load %arg6[%c0_9, %c0_10] {strides = array<i32: 2, 1>} : memref<22x128xf32, #tpu.memory_space<vmem>>, vector<8x128xf32>
    %c0_11 = arith.constant 0 : index
    %c0_12 = arith.constant 0 : index
    %c0_13 = arith.constant 0 : index
    %10 = vector.load %arg2[%c0_11, %c0_12, %c0_13] : memref<7x128x128xf32, #tpu.memory_space<vmem>>, vector<1x128x128xf32>
    %11 = vector.shape_cast %10 : vector<1x128x128xf32> to vector<128x128xf32>
    %cst_14 = arith.constant dense<0.000000e+00> : vector<8x128xf32>
    %12 = tpu.matmul %9, %11, %cst_14 {dimension_numbers = #tpu.dot_dimension_numbers<[1], [0], [0], [1], [0, 0, 1, 1], [], []>} : vector<8x128xf32>, vector<128x128xf32>, vector<8x128xf32> -> vector<8x128xf32>
    %13 = arith.addf %8, %12 : vector<8x128xf32>
    %c1 = arith.constant 1 : index
    %c0_15 = arith.constant 0 : index
    %14 = tpu.strided_load %arg6[%c1, %c0_15] {strides = array<i32: 2, 1>} : memref<22x128xf32, #tpu.memory_space<vmem>>, vector<8x128xf32>
    %c1_16 = arith.constant 1 : index
    %c0_17 = arith.constant 0 : index
    %c0_18 = arith.constant 0 : index
    %15 = vector.load %arg2[%c1_16, %c0_17, %c0_18] : memref<7x128x128xf32, #tpu.memory_space<vmem>>, vector<1x128x128xf32>
    %16 = vector.shape_cast %15 : vector<1x128x128xf32> to vector<128x128xf32>
    %cst_19 = arith.constant dense<0.000000e+00> : vector<8x128xf32>
    %17 = tpu.matmul %14, %16, %cst_19 {dimension_numbers = #tpu.dot_dimension_numbers<[1], [0], [0], [1], [0, 0, 1, 1], [], []>} : vector<8x128xf32>, vector<128x128xf32>, vector<8x128xf32> -> vector<8x128xf32>
    %18 = arith.addf %13, %17 : vector<8x128xf32>
    %c2 = arith.constant 2 : index
    %c0_20 = arith.constant 0 : index
    %19 = tpu.strided_load %arg6[%c2, %c0_20] {strides = array<i32: 2, 1>} : memref<22x128xf32, #tpu.memory_space<vmem>>, vector<8x128xf32>
    %c2_21 = arith.constant 2 : index
    %c0_22 = arith.constant 0 : index
    %c0_23 = arith.constant 0 : index
    %20 = vector.load %arg2[%c2_21, %c0_22, %c0_23] : memref<7x128x128xf32, #tpu.memory_space<vmem>>, vector<1x128x128xf32>
    %21 = vector.shape_cast %20 : vector<1x128x128xf32> to vector<128x128xf32>
    %cst_24 = arith.constant dense<0.000000e+00> : vector<8x128xf32>
    %22 = tpu.matmul %19, %21, %cst_24 {dimension_numbers = #tpu.dot_dimension_numbers<[1], [0], [0], [1], [0, 0, 1, 1], [], []>} : vector<8x128xf32>, vector<128x128xf32>, vector<8x128xf32> -> vector<8x128xf32>
    %23 = arith.addf %18, %22 : vector<8x128xf32>
    %c3_25 = arith.constant 3 : index
    %c0_26 = arith.constant 0 : index
    %24 = tpu.strided_load %arg6[%c3_25, %c0_26] {strides = array<i32: 2, 1>} : memref<22x128xf32, #tpu.memory_space<vmem>>, vector<8x128xf32>
    %c3_27 = arith.constant 3 : index
    %c0_28 = arith.constant 0 : index
    %c0_29 = arith.constant 0 : index
    %25 = vector.load %arg2[%c3_27, %c0_28, %c0_29] : memref<7x128x128xf32, #tpu.memory_space<vmem>>, vector<1x128x128xf32>
    %26 = vector.shape_cast %25 : vector<1x128x128xf32> to vector<128x128xf32>
    %cst_30 = arith.constant dense<0.000000e+00> : vector<8x128xf32>
    %27 = tpu.matmul %24, %26, %cst_30 {dimension_numbers = #tpu.dot_dimension_numbers<[1], [0], [0], [1], [0, 0, 1, 1], [], []>} : vector<8x128xf32>, vector<128x128xf32>, vector<8x128xf32> -> vector<8x128xf32>
    %28 = arith.addf %23, %27 : vector<8x128xf32>
    %c4 = arith.constant 4 : index
    %c0_31 = arith.constant 0 : index
    %29 = tpu.strided_load %arg6[%c4, %c0_31] {strides = array<i32: 2, 1>} : memref<22x128xf32, #tpu.memory_space<vmem>>, vector<8x128xf32>
    %c4_32 = arith.constant 4 : index
    %c0_33 = arith.constant 0 : index
    %c0_34 = arith.constant 0 : index
    %30 = vector.load %arg2[%c4_32, %c0_33, %c0_34] : memref<7x128x128xf32, #tpu.memory_space<vmem>>, vector<1x128x128xf32>
    %31 = vector.shape_cast %30 : vector<1x128x128xf32> to vector<128x128xf32>
    %cst_35 = arith.constant dense<0.000000e+00> : vector<8x128xf32>
    %32 = tpu.matmul %29, %31, %cst_35 {dimension_numbers = #tpu.dot_dimension_numbers<[1], [0], [0], [1], [0, 0, 1, 1], [], []>} : vector<8x128xf32>, vector<128x128xf32>, vector<8x128xf32> -> vector<8x128xf32>
    %33 = arith.addf %28, %32 : vector<8x128xf32>
    %c5 = arith.constant 5 : index
    %c0_36 = arith.constant 0 : index
    %34 = tpu.strided_load %arg6[%c5, %c0_36] {strides = array<i32: 2, 1>} : memref<22x128xf32, #tpu.memory_space<vmem>>, vector<8x128xf32>
    %c5_37 = arith.constant 5 : index
    %c0_38 = arith.constant 0 : index
    %c0_39 = arith.constant 0 : index
    %35 = vector.load %arg2[%c5_37, %c0_38, %c0_39] : memref<7x128x128xf32, #tpu.memory_space<vmem>>, vector<1x128x128xf32>
    %36 = vector.shape_cast %35 : vector<1x128x128xf32> to vector<128x128xf32>
    %cst_40 = arith.constant dense<0.000000e+00> : vector<8x128xf32>
    %37 = tpu.matmul %34, %36, %cst_40 {dimension_numbers = #tpu.dot_dimension_numbers<[1], [0], [0], [1], [0, 0, 1, 1], [], []>} : vector<8x128xf32>, vector<128x128xf32>, vector<8x128xf32> -> vector<8x128xf32>
    %38 = arith.addf %33, %37 : vector<8x128xf32>
    %c6 = arith.constant 6 : index
    %c0_41 = arith.constant 0 : index
    %39 = tpu.strided_load %arg6[%c6, %c0_41] {strides = array<i32: 2, 1>} : memref<22x128xf32, #tpu.memory_space<vmem>>, vector<8x128xf32>
    %c6_42 = arith.constant 6 : index
    %c0_43 = arith.constant 0 : index
    %c0_44 = arith.constant 0 : index
    %40 = vector.load %arg2[%c6_42, %c0_43, %c0_44] : memref<7x128x128xf32, #tpu.memory_space<vmem>>, vector<1x128x128xf32>
    %41 = vector.shape_cast %40 : vector<1x128x128xf32> to vector<128x128xf32>
    %cst_45 = arith.constant dense<0.000000e+00> : vector<8x128xf32>
    %42 = tpu.matmul %39, %41, %cst_45 {dimension_numbers = #tpu.dot_dimension_numbers<[1], [0], [0], [1], [0, 0, 1, 1], [], []>} : vector<8x128xf32>, vector<128x128xf32>, vector<8x128xf32> -> vector<8x128xf32>
    %43 = arith.addf %38, %42 : vector<8x128xf32>
    %c0_46 = arith.constant 0 : index
    %c0_47 = arith.constant 0 : index
    %c0_48 = arith.constant 0 : index
    %44 = tpu.strided_load %arg1[%c0_46, %c0_47, %c0_48] {strides = array<i32: 1, 2, 1>} : memref<1x16x128xf32, #tpu.memory_space<vmem>>, vector<1x8x128xf32>
    %45 = vector.shape_cast %44 : vector<1x8x128xf32> to vector<8x128xf32>
    %46 = arith.addf %45, %43 : vector<8x128xf32>
    %c0_49 = arith.constant 0 : index
    %c0_50 = arith.constant 0 : index
    %c0_51 = arith.constant 0 : index
    %47 = vector.load %arg3[%c0_49, %c0_50, %c0_51] : memref<2x128x64xf32, #tpu.memory_space<vmem>>, vector<1x128x64xf32>
    %48 = vector.shape_cast %47 : vector<1x128x64xf32> to vector<128x64xf32>
    %cst_52 = arith.constant dense<0.000000e+00> : vector<8x64xf32>
    %49 = tpu.matmul %46, %48, %cst_52 {dimension_numbers = #tpu.dot_dimension_numbers<[1], [0], [0], [1], [0, 0, 1, 1], [], []>} : vector<8x128xf32>, vector<128x64xf32>, vector<8x64xf32> -> vector<8x64xf32>
    %50 = arith.addf %7, %49 : vector<8x64xf32>
    %cst_53 = arith.constant 0.000000e+00 : f32
    %51 = vector.broadcast %cst_53 : f32 to vector<8x128xf32>
    %c1_54 = arith.constant 1 : index
    %c0_55 = arith.constant 0 : index
    %52 = tpu.strided_load %arg6[%c1_54, %c0_55] {strides = array<i32: 2, 1>} : memref<22x128xf32, #tpu.memory_space<vmem>>, vector<8x128xf32>
    %c0_56 = arith.constant 0 : index
    %c0_57 = arith.constant 0 : index
    %c0_58 = arith.constant 0 : index
    %53 = vector.load %arg2[%c0_56, %c0_57, %c0_58] : memref<7x128x128xf32, #tpu.memory_space<vmem>>, vector<1x128x128xf32>
    %54 = vector.shape_cast %53 : vector<1x128x128xf32> to vector<128x128xf32>
    %cst_59 = arith.constant dense<0.000000e+00> : vector<8x128xf32>
    %55 = tpu.matmul %52, %54, %cst_59 {dimension_numbers = #tpu.dot_dimension_numbers<[1], [0], [0], [1], [0, 0, 1, 1], [], []>} : vector<8x128xf32>, vector<128x128xf32>, vector<8x128xf32> -> vector<8x128xf32>
    %56 = arith.addf %51, %55 : vector<8x128xf32>
    %c2_60 = arith.constant 2 : index
    %c0_61 = arith.constant 0 : index
    %57 = tpu.strided_load %arg6[%c2_60, %c0_61] {strides = array<i32: 2, 1>} : memref<22x128xf32, #tpu.memory_space<vmem>>, vector<8x128xf32>
    %c1_62 = arith.constant 1 : index
    %c0_63 = arith.constant 0 : index
    %c0_64 = arith.constant 0 : index
    %58 = vector.load %arg2[%c1_62, %c0_63, %c0_64] : memref<7x128x128xf32, #tpu.memory_space<vmem>>, vector<1x128x128xf32>
    %59 = vector.shape_cast %58 : vector<1x128x128xf32> to vector<128x128xf32>
    %cst_65 = arith.constant dense<0.000000e+00> : vector<8x128xf32>
    %60 = tpu.matmul %57, %59, %cst_65 {dimension_numbers = #tpu.dot_dimension_numbers<[1], [0], [0], [1], [0, 0, 1, 1], [], []>} : vector<8x128xf32>, vector<128x128xf32>, vector<8x128xf32> -> vector<8x128xf32>
    %61 = arith.addf %56, %60 : vector<8x128xf32>
    %c3_66 = arith.constant 3 : index
    %c0_67 = arith.constant 0 : index
    %62 = tpu.strided_load %arg6[%c3_66, %c0_67] {strides = array<i32: 2, 1>} : memref<22x128xf32, #tpu.memory_space<vmem>>, vector<8x128xf32>
    %c2_68 = arith.constant 2 : index
    %c0_69 = arith.constant 0 : index
    %c0_70 = arith.constant 0 : index
    %63 = vector.load %arg2[%c2_68, %c0_69, %c0_70] : memref<7x128x128xf32, #tpu.memory_space<vmem>>, vector<1x128x128xf32>
    %64 = vector.shape_cast %63 : vector<1x128x128xf32> to vector<128x128xf32>
    %cst_71 = arith.constant dense<0.000000e+00> : vector<8x128xf32>
    %65 = tpu.matmul %62, %64, %cst_71 {dimension_numbers = #tpu.dot_dimension_numbers<[1], [0], [0], [1], [0, 0, 1, 1], [], []>} : vector<8x128xf32>, vector<128x128xf32>, vector<8x128xf32> -> vector<8x128xf32>
    %66 = arith.addf %61, %65 : vector<8x128xf32>
    %c4_72 = arith.constant 4 : index
    %c0_73 = arith.constant 0 : index
    %67 = tpu.strided_load %arg6[%c4_72, %c0_73] {strides = array<i32: 2, 1>} : memref<22x128xf32, #tpu.memory_space<vmem>>, vector<8x128xf32>
    %c3_74 = arith.constant 3 : index
    %c0_75 = arith.constant 0 : index
    %c0_76 = arith.constant 0 : index
    %68 = vector.load %arg2[%c3_74, %c0_75, %c0_76] : memref<7x128x128xf32, #tpu.memory_space<vmem>>, vector<1x128x128xf32>
    %69 = vector.shape_cast %68 : vector<1x128x128xf32> to vector<128x128xf32>
    %cst_77 = arith.constant dense<0.000000e+00> : vector<8x128xf32>
    %70 = tpu.matmul %67, %69, %cst_77 {dimension_numbers = #tpu.dot_dimension_numbers<[1], [0], [0], [1], [0, 0, 1, 1], [], []>} : vector<8x128xf32>, vector<128x128xf32>, vector<8x128xf32> -> vector<8x128xf32>
    %71 = arith.addf %66, %70 : vector<8x128xf32>
    %c5_78 = arith.constant 5 : index
    %c0_79 = arith.constant 0 : index
    %72 = tpu.strided_load %arg6[%c5_78, %c0_79] {strides = array<i32: 2, 1>} : memref<22x128xf32, #tpu.memory_space<vmem>>, vector<8x128xf32>
    %c4_80 = arith.constant 4 : index
    %c0_81 = arith.constant 0 : index
    %c0_82 = arith.constant 0 : index
    %73 = vector.load %arg2[%c4_80, %c0_81, %c0_82] : memref<7x128x128xf32, #tpu.memory_space<vmem>>, vector<1x128x128xf32>
    %74 = vector.shape_cast %73 : vector<1x128x128xf32> to vector<128x128xf32>
    %cst_83 = arith.constant dense<0.000000e+00> : vector<8x128xf32>
    %75 = tpu.matmul %72, %74, %cst_83 {dimension_numbers = #tpu.dot_dimension_numbers<[1], [0], [0], [1], [0, 0, 1, 1], [], []>} : vector<8x128xf32>, vector<128x128xf32>, vector<8x128xf32> -> vector<8x128xf32>
    %76 = arith.addf %71, %75 : vector<8x128xf32>
    %c6_84 = arith.constant 6 : index
    %c0_85 = arith.constant 0 : index
    %77 = tpu.strided_load %arg6[%c6_84, %c0_85] {strides = array<i32: 2, 1>} : memref<22x128xf32, #tpu.memory_space<vmem>>, vector<8x128xf32>
    %c5_86 = arith.constant 5 : index
    %c0_87 = arith.constant 0 : index
    %c0_88 = arith.constant 0 : index
    %78 = vector.load %arg2[%c5_86, %c0_87, %c0_88] : memref<7x128x128xf32, #tpu.memory_space<vmem>>, vector<1x128x128xf32>
    %79 = vector.shape_cast %78 : vector<1x128x128xf32> to vector<128x128xf32>
    %cst_89 = arith.constant dense<0.000000e+00> : vector<8x128xf32>
    %80 = tpu.matmul %77, %79, %cst_89 {dimension_numbers = #tpu.dot_dimension_numbers<[1], [0], [0], [1], [0, 0, 1, 1], [], []>} : vector<8x128xf32>, vector<128x128xf32>, vector<8x128xf32> -> vector<8x128xf32>
    %81 = arith.addf %76, %80 : vector<8x128xf32>
    %c7 = arith.constant 7 : index
    %c0_90 = arith.constant 0 : index
    %82 = tpu.strided_load %arg6[%c7, %c0_90] {strides = array<i32: 2, 1>} : memref<22x128xf32, #tpu.memory_space<vmem>>, vector<8x128xf32>
    %c6_91 = arith.constant 6 : index
    %c0_92 = arith.constant 0 : index
    %c0_93 = arith.constant 0 : index
    %83 = vector.load %arg2[%c6_91, %c0_92, %c0_93] : memref<7x128x128xf32, #tpu.memory_space<vmem>>, vector<1x128x128xf32>
    %84 = vector.shape_cast %83 : vector<1x128x128xf32> to vector<128x128xf32>
    %cst_94 = arith.constant dense<0.000000e+00> : vector<8x128xf32>
    %85 = tpu.matmul %82, %84, %cst_94 {dimension_numbers = #tpu.dot_dimension_numbers<[1], [0], [0], [1], [0, 0, 1, 1], [], []>} : vector<8x128xf32>, vector<128x128xf32>, vector<8x128xf32> -> vector<8x128xf32>
    %86 = arith.addf %81, %85 : vector<8x128xf32>
    %c0_95 = arith.constant 0 : index
    %c1_96 = arith.constant 1 : index
    %c0_97 = arith.constant 0 : index
    %87 = tpu.strided_load %arg1[%c0_95, %c1_96, %c0_97] {strides = array<i32: 1, 2, 1>} : memref<1x16x128xf32, #tpu.memory_space<vmem>>, vector<1x8x128xf32>
    %88 = vector.shape_cast %87 : vector<1x8x128xf32> to vector<8x128xf32>
    %89 = arith.addf %88, %86 : vector<8x128xf32>
    %c1_98 = arith.constant 1 : index
    %c0_99 = arith.constant 0 : index
    %c0_100 = arith.constant 0 : index
    %90 = vector.load %arg3[%c1_98, %c0_99, %c0_100] : memref<2x128x64xf32, #tpu.memory_space<vmem>>, vector<1x128x64xf32>
    %91 = vector.shape_cast %90 : vector<1x128x64xf32> to vector<128x64xf32>
    %cst_101 = arith.constant dense<0.000000e+00> : vector<8x64xf32>
    %92 = tpu.matmul %89, %91, %cst_101 {dimension_numbers = #tpu.dot_dimension_numbers<[1], [0], [0], [1], [0, 0, 1, 1], [], []>} : vector<8x128xf32>, vector<128x64xf32>, vector<8x64xf32> -> vector<8x64xf32>
    %93 = arith.addf %50, %92 : vector<8x64xf32>
    %c0_102 = arith.constant 0 : index
    %c0_103 = arith.constant 0 : index
    %94 = vector.load %arg4[%c0_102, %c0_103] : memref<1x64xf32, #tpu.memory_space<vmem>>, vector<1x64xf32>
    %95 = vector.broadcast %94 : vector<1x64xf32> to vector<8x64xf32>
    %96 = arith.addf %93, %95 : vector<8x64xf32>
    %c0_104 = arith.constant 0 : index
    %c0_105 = arith.constant 0 : index
    %c0_106 = arith.constant 0 : index
    %97 = vector.load %arg5[%c0_104, %c0_105, %c0_106] : memref<1x8x64xf32, #tpu.memory_space<vmem>>, vector<1x8x64xf32>
    %98 = vector.shape_cast %97 : vector<1x8x64xf32> to vector<8x64xf32>
    %99 = vector.shape_cast %96 : vector<8x64xf32> to vector<1x8x64xf32>
    tpu.vector_store %arg5[%c0_104, %c0_105, %c0_106], %99 {strides = array<i32>} : memref<1x8x64xf32, #tpu.memory_space<vmem>>, vector<1x8x64xf32>,
    return
  }
  func.func @transform_0(%arg0: i32) -> (i32, i32, i32) {
    %c0_i32 = arith.constant 0 : i32
    %c0_i32_0 = arith.constant 0 : i32
    %c0_i32_1 = arith.constant 0 : i32
    return %arg0, %c0_i32, %c0_i32_0 : i32, i32, i32
  }
  func.func @transform_1(%arg0: i32) -> (i32, i32, i32) {
    %c0_i32 = arith.constant 0 : i32
    %c0_i32_0 = arith.constant 0 : i32
    %c0_i32_1 = arith.constant 0 : i32
    %c0_i32_2 = arith.constant 0 : i32
    return %c0_i32, %c0_i32_0, %c0_i32_1 : i32, i32, i32
  }
  func.func @transform_2(%arg0: i32) -> (i32, i32, i32) {
    %c0_i32 = arith.constant 0 : i32
    %c0_i32_0 = arith.constant 0 : i32
    %c0_i32_1 = arith.constant 0 : i32
    %c0_i32_2 = arith.constant 0 : i32
    return %c0_i32, %c0_i32_0, %c0_i32_1 : i32, i32, i32
  }
  func.func @transform_3(%arg0: i32) -> (i32, i32) {
    %c0_i32 = arith.constant 0 : i32
    %c0_i32_0 = arith.constant 0 : i32
    %c0_i32_1 = arith.constant 0 : i32
    return %c0_i32, %c0_i32_0 : i32, i32
  }
  func.func @transform_4(%arg0: i32) -> (i32, i32, i32) {
    %c0_i32 = arith.constant 0 : i32
    %c0_i32_0 = arith.constant 0 : i32
    %c0_i32_1 = arith.constant 0 : i32
    return %arg0, %c0_i32, %c0_i32_0 : i32, i32, i32
  }
}

</mosaic_0001>

<llo_original>
// kernel: tpu_custom_call.1
$region0: #{tpu_custom_call.1}
  #allocation0 [shape = 'u32[]', space=smem, size = 0x4, offset = 0x4, fixed_abs, tag = 'smem constant byte address 0x4 - core index']
  #allocation1 [shape = 'u32[144,128]{1,0:T(1,128)}', space=vmem, size = 0x12000, scoped, tag = 'internal scratch']
  #allocation2 [shape = 'f32[22,128]{1,0:T(8,128)}', space=vmem, size = 0x3000, scoped, tag = 'scratch operand']
  %s0 = inlined_call_operand.vmem [shape: f32[2,16,128], index: 0, kind: input, shape index: {}]
  %s1 = inlined_call_operand.hbm [shape: f32[7,128,128], index: 1, kind: input, shape index: {}]
  %s2 = inlined_call_operand.vmem [shape: f32[2,128,64], index: 2, kind: input, shape index: {}]
  %s3 = inlined_call_operand.vmem [shape: f32[1,64], index: 3, kind: input, shape index: {}]
  %s4 = inlined_call_operand.hbm [shape: f32[2,8,64], index: 4, kind: output, shape index: {}]
  %s5 = sld [smem:[#allocation0]]
  $region53: #{tpu_custom_call.1} parent=0
    _
  %s7 = ssub.s32 1, %s5
  %s8 = scalar_select 0, %s7, %s5
  $region1: #{tpu_custom_call.1} parent=0
    #allocation3 [shape = 'u8[458752]{0}', space=vmem, size = 0x70000, scoped, tag = 'input window, operand 1, single buffered']
    #allocation4 [shape = 's32[2]{0}', space=sflag, size = 0x8, scoped, tag = 'scoped memory for tpu_custom_call.1']
    #allocation5 [shape = 's32[2]{0}', space=sflag, size = 0x8, scoped, tag = 'scoped memory for tpu_custom_call.1']
    #allocation6 [shape = 'u8[8192]{0}', space=vmem, size = 0x2000, scoped, tag = 'output window, operand 0']
    %9 = vsyncpa [#allocation4], 0
    %10 = vsyncpa [#allocation5], 0
    %s11 = scalar_lea.sflag [#allocation5], 1
    %12 = vsyncpa %s11, 0
    loop: start=0, step=1, limit=4
    $region2: #{tpu_custom_call.1} parent=1 // loop_pre_header
      _
    $region3: #{tpu_custom_call.1} parent=1 // loop_header
      %s14 = sphi 0, %s18
      %p15 = scmp.ge.s32.totalorder %s14, 4
      %s24 = sphi 0, %s26
      %s27 = sphi 0, %s24
      %s28 = sphi 0, %s27
      %s44 = sphi 0, %s28
      %s48 = sphi 0, %s48
      %s50 = sphi 0, %s48
      %s51 = sphi 0, %s50
      %s65 = sphi 0, %s51
      %s69 = sphi 0, %s69
      %s71 = sphi 0, %s69
      %s72 = sphi 0, %s71
      %s86 = sphi 0, %s72
      %s90 = sphi 0, %s90
      %s92 = sphi 0, %s90
      %s93 = sphi 0, %s92
      %s107 = sphi 0, %s93
      %s113 = sphi 0, %s115
      %s116 = sphi 0, %s113
      %s117 = sphi 0, %s116
      %s133 = sphi 0, %s117
    $region4: #{tpu_custom_call.1} parent=1 // loop_header_branch
      %17 = sbr.rel (%p15) target = $region8
    $region5: #{tpu_custom_call.1} parent=1 // loop_body
      %s19 = ssub.s32 %s14, 1
      %s20 = ssub.s32 %s14, 2
      %s21 = sadd.s32 %s14, 1
      %s22 = ssub.s32 %s14, %s21
      %p23 = scmp.eq.s32.totalorder %s22, 0
      %s25 = sadd.s32 %s24, 1
      %s26 = scalar_select %p23, %s24, %s25
      %p29 = pneg %p23
      %p30 = scmp.eq.s32.totalorder %s14, 1
      %p31 = por %p29, %p30
      %p32 = scmp.ne.s32.totalorder %s24, %s27
      %p33 = scmp.eq.s32.totalorder %s14, 0
      %p34 = por %p32, %p33
      %p35 = scmp.ne.s32.totalorder %s24, %s27
      %p36 = scmp.eq.s32.totalorder %s19, 1
      %p37 = por %p35, %p36
      %p38 = scmp.ne.s32.totalorder %s27, %s28
      %p39 = scmp.eq.s32.totalorder %s19, 0
      %p40 = por %p38, %p39
      %p41 = scmp.ne.s32.totalorder %s27, %s28
      %p42 = scmp.eq.s32.totalorder %s20, 1
      %p43 = por %p41, %p42
      %p45 = scmp.ne.s32.totalorder %s28, %s44
      %p46 = scmp.eq.s32.totalorder %s20, 0
      %p47 = por %p45, %p46
      %s49 = sadd.s32 %s48, 1
      %p52 = scmp.eq.s32.totalorder %s14, 1
      %p53 = scmp.ne.s32.totalorder %s48, %s50
      %p54 = scmp.eq.s32.totalorder %s14, 0
      %p55 = por %p53, %p54
      %p56 = scmp.ne.s32.totalorder %s48, %s50
      %p57 = scmp.eq.s32.totalorder %s19, 1
      %p58 = por %p56, %p57
      %p59 = scmp.ne.s32.totalorder %s50, %s51
      %p60 = scmp.eq.s32.totalorder %s19, 0
      %p61 = por %p59, %p60
      %p62 = scmp.ne.s32.totalorder %s50, %s51
      %p63 = scmp.eq.s32.totalorder %s20, 1
      %p64 = por %p62, %p63
      %p66 = scmp.ne.s32.totalorder %s51, %s65
      %p67 = scmp.eq.s32.totalorder %s20, 0
      %p68 = por %p66, %p67
      %s70 = sadd.s32 %s69, 1
      %p73 = scmp.eq.s32.totalorder %s14, 1
      %p74 = scmp.ne.s32.totalorder %s69, %s71
      %p75 = scmp.eq.s32.totalorder %s14, 0
      %p76 = por %p74, %p75
      %p77 = scmp.ne.s32.totalorder %s69, %s71
      %p78 = scmp.eq.s32.totalorder %s19, 1
      %p79 = por %p77, %p78
      %p80 = scmp.ne.s32.totalorder %s71, %s72
      %p81 = scmp.eq.s32.totalorder %s19, 0
      %p82 = por %p80, %p81
      %p83 = scmp.ne.s32.totalorder %s71, %s72
      %p84 = scmp.eq.s32.totalorder %s20, 1
      %p85 = por %p83, %p84
      %p87 = scmp.ne.s32.totalorder %s72, %s86
      %p88 = scmp.eq.s32.totalorder %s20, 0
      %p89 = por %p87, %p88
      %s91 = sadd.s32 %s90, 1
      %p94 = scmp.eq.s32.totalorder %s14, 1
      %p95 = scmp.ne.s32.totalorder %s90, %s92
      %p96 = scmp.eq.s32.totalorder %s14, 0
      %p97 = por %p95, %p96
      %p98 = scmp.ne.s32.totalorder %s90, %s92
      %p99 = scmp.eq.s32.totalorder %s19, 1
      %p100 = por %p98, %p99
      %p101 = scmp.ne.s32.totalorder %s92, %s93
      %p102 = scmp.eq.s32.totalorder %s19, 0
      %p103 = por %p101, %p102
      %p104 = scmp.ne.s32.totalorder %s92, %s93
      %p105 = scmp.eq.s32.totalorder %s20, 1
      %p106 = por %p104, %p105
      %p108 = scmp.ne.s32.totalorder %s93, %s107
      %p109 = scmp.eq.s32.totalorder %s20, 0
      %p110 = por %p108, %p109
      %s111 = ssub.s32 %s14, %s21
      %p112 = scmp.eq.s32.totalorder %s111, 0
      %s114 = sadd.s32 %s113, 1
      %s115 = scalar_select %p112, %s113, %s114
      %p118 = pneg %p112
      %p119 = scmp.eq.s32.totalorder %s14, 1
      %p120 = por %p118, %p119
      %p121 = scmp.ne.s32.totalorder %s113, %s116
      %p122 = scmp.eq.s32.totalorder %s14, 0
      %p123 = por %p121, %p122
      %p124 = scmp.ne.s32.totalorder %s113, %s116
      %p125 = scmp.eq.s32.totalorder %s19, 1
      %p126 = por %p124, %p125
      %p127 = scmp.ne.s32.totalorder %s116, %s117
      %p128 = scmp.eq.s32.totalorder %s19, 0
      %p129 = por %p127, %p128
      %p130 = scmp.ne.s32.totalorder %s116, %s117
      %p131 = scmp.eq.s32.totalorder %s20, 1
      %p132 = por %p130, %p131
      %p134 = scmp.ne.s32.totalorder %s117, %s133
      %p135 = scmp.eq.s32.totalorder %s20, 0
      %p136 = por %p134, %p135
      %p137 = scmp.le.s32.totalorder 1, %s14
      %p138 = scmp.lt.s32.totalorder %s14, 3
      %p139 = pnand %p137, %p138
      %p140 = pneg %p139
      // Predicated region
      $region9: #{tpu_custom_call.1} parent=5 // pred_check
        _
      $region10: #{tpu_custom_call.1} parent=5 // pred_check_branch
        %142 = sbr.rel (%p139) target = $region12
      $region11: #{tpu_custom_call.1} parent=5 // pred_region
        %s143 = ssub.s32 %s14, 1
        // Predicated region
        $region13: #{tpu_custom_call.1} parent=11 // pred_check
          %p144 = pneg %p61
        $region14: #{tpu_custom_call.1} parent=11 // pred_check_branch
          %146 = sbr.rel (%p144) target = $region16
        $region15: #{tpu_custom_call.1} parent=11 // pred_region
          %s148 = ssub.s32 14336, 14336
          %149 = vsyncadd [#allocation4], %s148
          %s150 = sshll.u32 [#allocation3], 4
          %s151 = int_to_ptr.vmem [resolvable:$true] %s150
          %156 = dma.hbm_to_vmem [thread:$0]  %s1, 14336, %s151, [#allocation4], 128, 128, 8
        $region16: #{tpu_custom_call.1} parent=11 // pred_fallthru
          _
        // Predicated region
        $region17: #{tpu_custom_call.1} parent=11 // pred_check
          %p157 = pneg %p82
        $region18: #{tpu_custom_call.1} parent=11 // pred_check_branch
          %159 = sbr.rel (%p157) target = $region20
        $region19: #{tpu_custom_call.1} parent=11 // pred_region
          _
        $region20: #{tpu_custom_call.1} parent=11 // pred_fallthru
          _
        // Predicated region
        $region21: #{tpu_custom_call.1} parent=11 // pred_check
          %p160 = pneg %p103
        $region22: #{tpu_custom_call.1} parent=11 // pred_check_branch
          %162 = sbr.rel (%p160) target = $region24
        $region23: #{tpu_custom_call.1} parent=11 // pred_region
          _
        $region24: #{tpu_custom_call.1} parent=11 // pred_fallthru
          _
      $region12: #{tpu_custom_call.1} parent=5 // pred_fallthru
        _
      %p163 = scmp.lt.s32.totalorder %s14, 2
      // Predicated region
      $region25: #{tpu_custom_call.1} parent=5 // pred_check
        %p164 = pneg %p163
      $region26: #{tpu_custom_call.1} parent=5 // pred_check_branch
        %166 = sbr.rel (%p164) target = $region28
      $region27: #{tpu_custom_call.1} parent=5 // pred_region
        // Predicated region
        $region29: #{tpu_custom_call.1} parent=27 // pred_check
          %p167 = pneg %p34
        $region30: #{tpu_custom_call.1} parent=27 // pred_check_branch
          %169 = sbr.rel (%p167) target = $region32
        $region31: #{tpu_custom_call.1} parent=27 // pred_region
          %p170 = scmp.lt.s32.totalorder %s14, 1
          %s171 = scalar_select %p170, %s14, 1
          %s172 = smul.addr %s171, 2
          %s173 = smul.addr %s172, 8
          %s174 = scalar_lea.vmem %s0, %s173
        $region32: #{tpu_custom_call.1} parent=27 // pred_fallthru
          _
      $region28: #{tpu_custom_call.1} parent=5 // pred_fallthru
        _
      %p175 = scmp.le.s32.totalorder 1, %s14
      %p176 = scmp.lt.s32.totalorder %s14, 3
      %p177 = pnand %p175, %p176
      %p178 = pneg %p177
      // Predicated region
      $region33: #{tpu_custom_call.1} parent=5 // pred_check
        _
      $region34: #{tpu_custom_call.1} parent=5 // pred_check_branch
        %180 = sbr.rel (%p177) target = $region36
      $region35: #{tpu_custom_call.1} parent=5 // pred_region
        %s181 = ssub.s32 %s14, 1
        // Predicated region
        $region37: #{tpu_custom_call.1} parent=35 // pred_check
          %p182 = pneg %p61
        $region38: #{tpu_custom_call.1} parent=35 // pred_check_branch
          %184 = sbr.rel (%p182) target = $region40
        $region39: #{tpu_custom_call.1} parent=35 // pred_region
          %185 = dma.done [#allocation4], 14336
        $region40: #{tpu_custom_call.1} parent=35 // pred_fallthru
          _
        %p186 = scmp.lt.s32.totalorder %s19, 1
        %s187 = scalar_select %p186, %s19, 1
        %s188 = smul.addr %s187, 2
        %s189 = smul.addr %s188, 8
        %s190 = scalar_lea.vmem %s0, %s189
        %p191 = pneg %p40
        %p192 = pneg %p37
        %p193 = pneg %p61
        %p194 = pneg %p58
        %p195 = pneg %p82
        %p196 = pneg %p79
        %p197 = pneg %p103
        %p198 = pneg %p100
        %p199 = pneg %p129
        %p200 = pneg %p126
        %s201 = sand.u32 %s116, 1
        %s202 = scalar_lea.sflag [#allocation5], %s201
        %s203 = sand.u32 %s116, 1
        %s204 = smul.addr %s203, 8
        %s205 = scalar_lea.vmem [#allocation6], %s204
        %p206 = scmp.lt.s32.totalorder %s19, 1
        %s207 = scalar_select %p206, %s19, 1
        %s208 = smul.addr %s207, 2
        %s209 = smul.addr %s208, 8
        %s210 = scalar_lea.vmem %s0, %s209
        %211 = vst [vmem:[#allocation2] sm:$0x7] 0.0
        %212 = vst [vmem:[#allocation2 + $0x13] sm:$0x7] 0.0
        %v213 = vld [vmem:[%s210] sm:$0xff]
        %v214 = vld [vmem:[%s210 + $0x8] sm:$0xff]
        %215 = vst [vmem:[#allocation2 + $0x3] sm:$0xff] %v213
        %216 = vst [vmem:[#allocation2 + $0xb] sm:$0xff] %v214
        %v217 = vld [vmem:[#allocation2] ss:$2 sm:$0xff]
        %v218 = vld [vmem:[#allocation3] sm:$0xff]
        %v219 = vld [vmem:[#allocation3 + $0x8] sm:$0xff]
        %v220 = vld [vmem:[#allocation3 + $0x10] sm:$0xff]
        %v221 = vld [vmem:[#allocation3 + $0x18] sm:$0xff]
        %v222 = vld [vmem:[#allocation3 + $0x20] sm:$0xff]
        %v223 = vld [vmem:[#allocation3 + $0x28] sm:$0xff]
        %v224 = vld [vmem:[#allocation3 + $0x30] sm:$0xff]
        %v225 = vld [vmem:[#allocation3 + $0x38] sm:$0xff]
        %v226 = vld [vmem:[#allocation3 + $0x40] sm:$0xff]
        %v227 = vld [vmem:[#allocation3 + $0x48] sm:$0xff]
        %v228 = vld [vmem:[#allocation3 + $0x50] sm:$0xff]
        %v229 = vld [vmem:[#allocation3 + $0x58] sm:$0xff]
        %v230 = vld [vmem:[#allocation3 + $0x60] sm:$0xff]
        %v231 = vld [vmem:[#allocation3 + $0x68] sm:$0xff]
        %v232 = vld [vmem:[#allocation3 + $0x70] sm:$0xff]
        %v233 = vld [vmem:[#allocation3 + $0x78] sm:$0xff]
        %s234 = scalar_lea.vmem [#allocation2], 1
        %v235 = vld [vmem:[%s234] ss:$2 sm:$0xff]
        %s236 = scalar_lea.vmem [#allocation3], 128
        %v237 = vld [vmem:[%s236] sm:$0xff]
        %v238 = vld [vmem:[%s236 + $0x8] sm:$0xff]
        %v239 = vld [vmem:[%s236 + $0x10] sm:$0xff]
        %v240 = vld [vmem:[%s236 + $0x18] sm:$0xff]
        %v241 = vld [vmem:[%s236 + $0x20] sm:$0xff]
        %v242 = vld [vmem:[%s236 + $0x28] sm:$0xff]
        %v243 = vld [vmem:[%s236 + $0x30] sm:$0xff]
        %v244 = vld [vmem:[%s236 + $0x38] sm:$0xff]
        %v245 = vld [vmem:[%s236 + $0x40] sm:$0xff]
        %v246 = vld [vmem:[%s236 + $0x48] sm:$0xff]
        %v247 = vld [vmem:[%s236 + $0x50] sm:$0xff]
        %v248 = vld [vmem:[%s236 + $0x58] sm:$0xff]
        %v249 = vld [vmem:[%s236 + $0x60] sm:$0xff]
        %v250 = vld [vmem:[%s236 + $0x68] sm:$0xff]
        %v251 = vld [vmem:[%s236 + $0x70] sm:$0xff]
        %v252 = vld [vmem:[%s236 + $0x78] sm:$0xff]
        %253 = vmatprep.subr.mxu0 0.0
        %254 = vmatpush1.msra.mxu0 %v237
        %255 = vmatprep.subr.mxu0 0.0
        %256 = vmatpush1.msra.mxu0 %v238
        %257 = vmatprep.subr.mxu0 0.0
        %258 = vmatpush1.msra.mxu0 %v239
        %259 = vmatprep.subr.mxu0 0.0
        %260 = vmatpush1.msra.mxu0 %v240
        %261 = vmatprep.subr.mxu0 0.0
        %262 = vmatpush1.msra.mxu0 %v241
        %263 = vmatprep.subr.mxu0 0.0
        %264 = vmatpush1.msra.mxu0 %v242
        %265 = vmatprep.subr.mxu0 0.0
        %266 = vmatpush1.msra.mxu0 %v243
        %267 = vmatprep.subr.mxu0 0.0
        %268 = vmatpush1.msra.mxu0 %v244
        %269 = vmatprep.subr.mxu0 0.0
        %270 = vmatpush1.msra.mxu0 %v245
        %271 = vmatprep.subr.mxu0 0.0
        %272 = vmatpush1.msra.mxu0 %v246
        %273 = vmatprep.subr.mxu0 0.0
        %274 = vmatpush1.msra.mxu0 %v247
        %275 = vmatprep.subr.mxu0 0.0
        %276 = vmatpush1.msra.mxu0 %v248
        %277 = vmatprep.subr.mxu0 0.0
        %278 = vmatpush1.msra.mxu0 %v249
        %279 = vmatprep.subr.mxu0 0.0
        %280 = vmatpush1.msra.mxu0 %v250
        %281 = vmatprep.subr.mxu0 0.0
        %282 = vmatpush1.msra.mxu0 %v251
        %283 = vmatprep.subr.mxu0 0.0
        %284 = vmatpush1.msra.mxu0 %v252
        %285 = vmatprep.subr.mxu0 0.0
        %286 = vmatpush1.msra.mxu0 0.0
        %287 = vmatprep.subr.mxu0 0.0
        %288 = vmatpush1.msra.mxu0 0.0
        %289 = vmatprep.subr.mxu0 0.0
        %290 = vmatpush1.msra.mxu0 0.0
        %291 = vmatprep.subr.mxu0 0.0
        %292 = vmatpush1.msra.mxu0 0.0
        %293 = vmatprep.subr.mxu0 0.0
        %294 = vmatpush1.msra.mxu0 0.0
        %295 = vmatprep.subr.mxu0 0.0
        %296 = vmatpush1.msra.mxu0 0.0
        %297 = vmatprep.subr.mxu0 0.0
        %298 = vmatpush1.msra.mxu0 0.0
        %299 = vmatprep.subr.mxu0 0.0
        %300 = vmatpush1.msra.mxu0 0.0
        %301 = vmatprep.subr.mxu0 0.0
        %302 = vmatpush1.msra.mxu0 0.0
        %303 = vmatprep.subr.mxu0 0.0
        %304 = vmatpush1.msra.mxu0 0.0
        %305 = vmatprep.subr.mxu0 0.0
        %306 = vmatpush1.msra.mxu0 0.0
        %307 = vmatprep.subr.mxu0 0.0
        %308 = vmatpush1.msra.mxu0 0.0
        %309 = vmatprep.subr.mxu0 0.0
        %310 = vmatpush1.msra.mxu0 0.0
        %311 = vmatprep.subr.mxu0 0.0
        %312 = vmatpush1.msra.mxu0 0.0
        %313 = vmatprep.subr.mxu0 0.0
        %314 = vmatpush1.msra.mxu0 0.0
        %315 = vmatprep.subr.mxu0 0.0
        %316 = vmatpush1.msra.mxu0 0.0
        %317 = vmatprep.mubr.f32.mxu0 0.0
        %318 = vmatmul.mubr.f32.gmra.mrb[0].mxu0 %v235
        %v319 = vpop.f32.mrb[0].mxu0
        %v320 = vadd.f32 0.0, %v319
        %v321 = vpop.f32.mrb[0].mxu0
        %322 = vdwg.mxu0
        %323 = vmatprep.subr.mxu0 0.0
        %324 = vmatpush1.msra.mxu0 %v218
        %325 = vmatprep.subr.mxu0 0.0
        %326 = vmatpush1.msra.mxu0 %v219
        %327 = vmatprep.subr.mxu0 0.0
        %328 = vmatpush1.msra.mxu0 %v220
        %329 = vmatprep.subr.mxu0 0.0
        %330 = vmatpush1.msra.mxu0 %v221
        %331 = vmatprep.subr.mxu0 0.0
        %332 = vmatpush1.msra.mxu0 %v222
        %333 = vmatprep.subr.mxu0 0.0
        %334 = vmatpush1.msra.mxu0 %v223
        %335 = vmatprep.subr.mxu0 0.0
        %336 = vmatpush1.msra.mxu0 %v224
        %337 = vmatprep.subr.mxu0 0.0
        %338 = vmatpush1.msra.mxu0 %v225
        %339 = vmatprep.subr.mxu0 0.0
        %340 = vmatpush1.msra.mxu0 %v226
        %341 = vmatprep.subr.mxu0 0.0
        %342 = vmatpush1.msra.mxu0 %v227
        %343 = vmatprep.subr.mxu0 0.0
        %344 = vmatpush1.msra.mxu0 %v228
        %345 = vmatprep.subr.mxu0 0.0
        %346 = vmatpush1.msra.mxu0 %v229
        %347 = vmatprep.subr.mxu0 0.0
        %348 = vmatpush1.msra.mxu0 %v230
        %349 = vmatprep.subr.mxu0 0.0
        %350 = vmatpush1.msra.mxu0 %v231
        %351 = vmatprep.subr.mxu0 0.0
        %352 = vmatpush1.msra.mxu0 %v232
        %353 = vmatprep.subr.mxu0 0.0
        %354 = vmatpush1.msra.mxu0 %v233
        %355 = vmatprep.subr.mxu0 0.0
        %356 = vmatpush1.msra.mxu0 0.0
        %357 = vmatprep.subr.mxu0 0.0
        %358 = vmatpush1.msra.mxu0 0.0
        %359 = vmatprep.subr.mxu0 0.0
        %360 = vmatpush1.msra.mxu0 0.0
        %361 = vmatprep.subr.mxu0 0.0
        %362 = vmatpush1.msra.mxu0 0.0
        %363 = vmatprep.subr.mxu0 0.0
        %364 = vmatpush1.msra.mxu0 0.0
        %365 = vmatprep.subr.mxu0 0.0
        %366 = vmatpush1.msra.mxu0 0.0
        %367 = vmatprep.subr.mxu0 0.0
        %368 = vmatpush1.msra.mxu0 0.0
        %369 = vmatprep.subr.mxu0 0.0
        %370 = vmatpush1.msra.mxu0 0.0
        %371 = vmatprep.subr.mxu0 0.0
        %372 = vmatpush1.msra.mxu0 0.0
        %373 = vmatprep.subr.mxu0 0.0
        %374 = vmatpush1.msra.mxu0 0.0
        %375 = vmatprep.subr.mxu0 0.0
        %376 = vmatpush1.msra.mxu0 0.0
        %377 = vmatprep.subr.mxu0 0.0
        %378 = vmatpush1.msra.mxu0 0.0
        %379 = vmatprep.subr.mxu0 0.0
        %380 = vmatpush1.msra.mxu0 0.0
        %381 = vmatprep.subr.mxu0 0.0
        %382 = vmatpush1.msra.mxu0 0.0
        %383 = vmatprep.subr.mxu0 0.0
        %384 = vmatpush1.msra.mxu0 0.0
        %385 = vmatprep.subr.mxu0 0.0
        %386 = vmatpush1.msra.mxu0 0.0
        %387 = vmatprep.mubr.f32.mxu0 0.0
        %388 = vmatmul.mubr.f32.gmra.mrb[0].mxu0 %v217
        %v389 = vpop.f32.mrb[0].mxu0
        %v390 = vadd.f32 %v320, %v389
        %v391 = vpop.f32.mrb[0].mxu0
        %392 = vdwg.mxu0
        %s393 = scalar_lea.vmem [#allocation2], 2
        %v394 = vld [vmem:[%s393] ss:$2 sm:$0xff]
        %s395 = scalar_lea.vmem [#allocation3], 256
        %v396 = vld [vmem:[%s395] sm:$0xff]
        %v397 = vld [vmem:[%s395 + $0x8] sm:$0xff]
        %v398 = vld [vmem:[%s395 + $0x10] sm:$0xff]
        %v399 = vld [vmem:[%s395 + $0x18] sm:$0xff]
        %v400 = vld [vmem:[%s395 + $0x20] sm:$0xff]
        %v401 = vld [vmem:[%s395 + $0x28] sm:$0xff]
        %v402 = vld [vmem:[%s395 + $0x30] sm:$0xff]
        %v403 = vld [vmem:[%s395 + $0x38] sm:$0xff]
        %v404 = vld [vmem:[%s395 + $0x40] sm:$0xff]
        %v405 = vld [vmem:[%s395 + $0x48] sm:$0xff]
        %v406 = vld [vmem:[%s395 + $0x50] sm:$0xff]
        %v407 = vld [vmem:[%s395 + $0x58] sm:$0xff]
        %v408 = vld [vmem:[%s395 + $0x60] sm:$0xff]
        %v409 = vld [vmem:[%s395 + $0x68] sm:$0xff]
        %v410 = vld [vmem:[%s395 + $0x70] sm:$0xff]
        %v411 = vld [vmem:[%s395 + $0x78] sm:$0xff]
        %412 = vmatprep.subr.mxu0 0.0
        %413 = vmatpush1.msra.mxu0 %v396
        %414 = vmatprep.subr.mxu0 0.0
        %415 = vmatpush1.msra.mxu0 %v397
        %416 = vmatprep.subr.mxu0 0.0
        %417 = vmatpush1.msra.mxu0 %v398
        %418 = vmatprep.subr.mxu0 0.0
        %419 = vmatpush1.msra.mxu0 %v399
        %420 = vmatprep.subr.mxu0 0.0
        %421 = vmatpush1.msra.mxu0 %v400
        %422 = vmatprep.subr.mxu0 0.0
        %423 = vmatpush1.msra.mxu0 %v401
        %424 = vmatprep.subr.mxu0 0.0
        %425 = vmatpush1.msra.mxu0 %v402
        %426 = vmatprep.subr.mxu0 0.0
        %427 = vmatpush1.msra.mxu0 %v403
        %428 = vmatprep.subr.mxu0 0.0
        %429 = vmatpush1.msra.mxu0 %v404
        %430 = vmatprep.subr.mxu0 0.0
        %431 = vmatpush1.msra.mxu0 %v405
        %432 = vmatprep.subr.mxu0 0.0
        %433 = vmatpush1.msra.mxu0 %v406
        %434 = vmatprep.subr.mxu0 0.0
        %435 = vmatpush1.msra.mxu0 %v407
        %436 = vmatprep.subr.mxu0 0.0
        %437 = vmatpush1.msra.mxu0 %v408
        %438 = vmatprep.subr.mxu0 0.0
        %439 = vmatpush1.msra.mxu0 %v409
        %440 = vmatprep.subr.mxu0 0.0
        %441 = vmatpush1.msra.mxu0 %v410
        %442 = vmatprep.subr.mxu0 0.0
        %443 = vmatpush1.msra.mxu0 %v411
        %444 = vmatprep.subr.mxu0 0.0
        %445 = vmatpush1.msra.mxu0 0.0
        %446 = vmatprep.subr.mxu0 0.0
        %447 = vmatpush1.msra.mxu0 0.0
        %448 = vmatprep.subr.mxu0 0.0
        %449 = vmatpush1.msra.mxu0 0.0
        %450 = vmatprep.subr.mxu0 0.0
        %451 = vmatpush1.msra.mxu0 0.0
        %452 = vmatprep.subr.mxu0 0.0
        %453 = vmatpush1.msra.mxu0 0.0
        %454 = vmatprep.subr.mxu0 0.0
        %455 = vmatpush1.msra.mxu0 0.0
        %456 = vmatprep.subr.mxu0 0.0
        %457 = vmatpush1.msra.mxu0 0.0
        %458 = vmatprep.subr.mxu0 0.0
        %459 = vmatpush1.msra.mxu0 0.0
        %460 = vmatprep.subr.mxu0 0.0
        %461 = vmatpush1.msra.mxu0 0.0
        %462 = vmatprep.subr.mxu0 0.0
        %463 = vmatpush1.msra.mxu0 0.0
        %464 = vmatprep.subr.mxu0 0.0
        %465 = vmatpush1.msra.mxu0 0.0
        %466 = vmatprep.subr.mxu0 0.0
        %467 = vmatpush1.msra.mxu0 0.0
        %468 = vmatprep.subr.mxu0 0.0
        %469 = vmatpush1.msra.mxu0 0.0
        %470 = vmatprep.subr.mxu0 0.0
        %471 = vmatpush1.msra.mxu0 0.0
        %472 = vmatprep.subr.mxu0 0.0
        %473 = vmatpush1.msra.mxu0 0.0
        %474 = vmatprep.subr.mxu0 0.0
        %475 = vmatpush1.msra.mxu0 0.0
        %476 = vmatprep.mubr.f32.mxu0 0.0
        %477 = vmatmul.mubr.f32.gmra.mrb[0].mxu0 %v394
        %v478 = vpop.f32.mrb[0].mxu0
        %v479 = vadd.f32 0.0, %v478
        %v480 = vpop.f32.mrb[0].mxu0
        %481 = vdwg.mxu0
        %v482 = vadd.f32 %v390, %v479
        %s483 = scalar_lea.vmem [#allocation2], 3
        %v484 = vld [vmem:[%s483] ss:$2 sm:$0xff]
        %s485 = scalar_lea.vmem [#allocation3], 384
        %v486 = vld [vmem:[%s485] sm:$0xff]
        %v487 = vld [vmem:[%s485 + $0x8] sm:$0xff]
        %v488 = vld [vmem:[%s485 + $0x10] sm:$0xff]
        %v489 = vld [vmem:[%s485 + $0x18] sm:$0xff]
        %v490 = vld [vmem:[%s485 + $0x20] sm:$0xff]
        %v491 = vld [vmem:[%s485 + $0x28] sm:$0xff]
        %v492 = vld [vmem:[%s485 + $0x30] sm:$0xff]
        %v493 = vld [vmem:[%s485 + $0x38] sm:$0xff]
        %v494 = vld [vmem:[%s485 + $0x40] sm:$0xff]
        %v495 = vld [vmem:[%s485 + $0x48] sm:$0xff]
        %v496 = vld [vmem:[%s485 + $0x50] sm:$0xff]
        %v497 = vld [vmem:[%s485 + $0x58] sm:$0xff]
        %v498 = vld [vmem:[%s485 + $0x60] sm:$0xff]
        %v499 = vld [vmem:[%s485 + $0x68] sm:$0xff]
        %v500 = vld [vmem:[%s485 + $0x70] sm:$0xff]
        %v501 = vld [vmem:[%s485 + $0x78] sm:$0xff]
        %502 = vmatprep.subr.mxu0 0.0
        %503 = vmatpush1.msra.mxu0 %v486
        %504 = vmatprep.subr.mxu0 0.0
        %505 = vmatpush1.msra.mxu0 %v487
        %506 = vmatprep.subr.mxu0 0.0
        %507 = vmatpush1.msra.mxu0 %v488
        %508 = vmatprep.subr.mxu0 0.0
        %509 = vmatpush1.msra.mxu0 %v489
        %510 = vmatprep.subr.mxu0 0.0
        %511 = vmatpush1.msra.mxu0 %v490
        %512 = vmatprep.subr.mxu0 0.0
        %513 = vmatpush1.msra.mxu0 %v491
        %514 = vmatprep.subr.mxu0 0.0
        %515 = vmatpush1.msra.mxu0 %v492
        %516 = vmatprep.subr.mxu0 0.0
        %517 = vmatpush1.msra.mxu0 %v493
        %518 = vmatprep.subr.mxu0 0.0
        %519 = vmatpush1.msra.mxu0 %v494
        %520 = vmatprep.subr.mxu0 0.0
        %521 = vmatpush1.msra.mxu0 %v495
        %522 = vmatprep.subr.mxu0 0.0
        %523 = vmatpush1.msra.mxu0 %v496
        %524 = vmatprep.subr.mxu0 0.0
        %525 = vmatpush1.msra.mxu0 %v497
        %526 = vmatprep.subr.mxu0 0.0
        %527 = vmatpush1.msra.mxu0 %v498
        %528 = vmatprep.subr.mxu0 0.0
        %529 = vmatpush1.msra.mxu0 %v499
        %530 = vmatprep.subr.mxu0 0.0
        %531 = vmatpush1.msra.mxu0 %v500
        %532 = vmatprep.subr.mxu0 0.0
        %533 = vmatpush1.msra.mxu0 %v501
        %534 = vmatprep.subr.mxu0 0.0
        %535 = vmatpush1.msra.mxu0 0.0
        %536 = vmatprep.subr.mxu0 0.0
        %537 = vmatpush1.msra.mxu0 0.0
        %538 = vmatprep.subr.mxu0 0.0
        %539 = vmatpush1.msra.mxu0 0.0
        %540 = vmatprep.subr.mxu0 0.0
        %541 = vmatpush1.msra.mxu0 0.0
        %542 = vmatprep.subr.mxu0 0.0
        %543 = vmatpush1.msra.mxu0 0.0
        %544 = vmatprep.subr.mxu0 0.0
        %545 = vmatpush1.msra.mxu0 0.0
        %546 = vmatprep.subr.mxu0 0.0
        %547 = vmatpush1.msra.mxu0 0.0
        %548 = vmatprep.subr.mxu0 0.0
        %549 = vmatpush1.msra.mxu0 0.0
        %550 = vmatprep.subr.mxu0 0.0
        %551 = vmatpush1.msra.mxu0 0.0
        %552 = vmatprep.subr.mxu0 0.0
        %553 = vmatpush1.msra.mxu0 0.0
        %554 = vmatprep.subr.mxu0 0.0
        %555 = vmatpush1.msra.mxu0 0.0
        %556 = vmatprep.subr.mxu0 0.0
        %557 = vmatpush1.msra.mxu0 0.0
        %558 = vmatprep.subr.mxu0 0.0
        %559 = vmatpush1.msra.mxu0 0.0
        %560 = vmatprep.subr.mxu0 0.0
        %561 = vmatpush1.msra.mxu0 0.0
        %562 = vmatprep.subr.mxu0 0.0
        %563 = vmatpush1.msra.mxu0 0.0
        %564 = vmatprep.subr.mxu0 0.0
        %565 = vmatpush1.msra.mxu0 0.0
        %566 = vmatprep.mubr.f32.mxu0 0.0
        %567 = vmatmul.mubr.f32.gmra.mrb[0].mxu0 %v484
        %v568 = vpop.f32.mrb[0].mxu0
        %v569 = vadd.f32 0.0, %v568
        %v570 = vpop.f32.mrb[0].mxu0
        %571 = vdwg.mxu0
        %v572 = vadd.f32 %v482, %v569
        %s573 = scalar_lea.vmem [#allocation2], 4
        %v574 = vld [vmem:[%s573] ss:$2 sm:$0xff]
        %s575 = scalar_lea.vmem [#allocation3], 512
        %v576 = vld [vmem:[%s575] sm:$0xff]
        %v577 = vld [vmem:[%s575 + $0x8] sm:$0xff]
        %v578 = vld [vmem:[%s575 + $0x10] sm:$0xff]
        %v579 = vld [vmem:[%s575 + $0x18] sm:$0xff]
        %v580 = vld [vmem:[%s575 + $0x20] sm:$0xff]
        %v581 = vld [vmem:[%s575 + $0x28] sm:$0xff]
        %v582 = vld [vmem:[%s575 + $0x30] sm:$0xff]
        %v583 = vld [vmem:[%s575 + $0x38] sm:$0xff]
        %v584 = vld [vmem:[%s575 + $0x40] sm:$0xff]
        %v585 = vld [vmem:[%s575 + $0x48] sm:$0xff]
        %v586 = vld [vmem:[%s575 + $0x50] sm:$0xff]
        %v587 = vld [vmem:[%s575 + $0x58] sm:$0xff]
        %v588 = vld [vmem:[%s575 + $0x60] sm:$0xff]
        %v589 = vld [vmem:[%s575 + $0x68] sm:$0xff]
        %v590 = vld [vmem:[%s575 + $0x70] sm:$0xff]
        %v591 = vld [vmem:[%s575 + $0x78] sm:$0xff]
        %592 = vmatprep.subr.mxu0 0.0
        %593 = vmatpush1.msra.mxu0 %v576
        %594 = vmatprep.subr.mxu0 0.0
        %595 = vmatpush1.msra.mxu0 %v577
        %596 = vmatprep.subr.mxu0 0.0
        %597 = vmatpush1.msra.mxu0 %v578
        %598 = vmatprep.subr.mxu0 0.0
        %599 = vmatpush1.msra.mxu0 %v579
        %600 = vmatprep.subr.mxu0 0.0
        %601 = vmatpush1.msra.mxu0 %v580
        %602 = vmatprep.subr.mxu0 0.0
        %603 = vmatpush1.msra.mxu0 %v581
        %604 = vmatprep.subr.mxu0 0.0
        %605 = vmatpush1.msra.mxu0 %v582
        %606 = vmatprep.subr.mxu0 0.0
        %607 = vmatpush1.msra.mxu0 %v583
        %608 = vmatprep.subr.mxu0 0.0
        %609 = vmatpush1.msra.mxu0 %v584
        %610 = vmatprep.subr.mxu0 0.0
        %611 = vmatpush1.msra.mxu0 %v585
        %612 = vmatprep.subr.mxu0 0.0
        %613 = vmatpush1.msra.mxu0 %v586
        %614 = vmatprep.subr.mxu0 0.0
        %615 = vmatpush1.msra.mxu0 %v587
        %616 = vmatprep.subr.mxu0 0.0
        %617 = vmatpush1.msra.mxu0 %v588
        %618 = vmatprep.subr.mxu0 0.0
        %619 = vmatpush1.msra.mxu0 %v589
        %620 = vmatprep.subr.mxu0 0.0
        %621 = vmatpush1.msra.mxu0 %v590
        %622 = vmatprep.subr.mxu0 0.0
        %623 = vmatpush1.msra.mxu0 %v591
        %624 = vmatprep.subr.mxu0 0.0
        %625 = vmatpush1.msra.mxu0 0.0
        %626 = vmatprep.subr.mxu0 0.0
        %627 = vmatpush1.msra.mxu0 0.0
        %628 = vmatprep.subr.mxu0 0.0
        %629 = vmatpush1.msra.mxu0 0.0
        %630 = vmatprep.subr.mxu0 0.0
        %631 = vmatpush1.msra.mxu0 0.0
        %632 = vmatprep.subr.mxu0 0.0
        %633 = vmatpush1.msra.mxu0 0.0
        %634 = vmatprep.subr.mxu0 0.0
        %635 = vmatpush1.msra.mxu0 0.0
        %636 = vmatprep.subr.mxu0 0.0
        %637 = vmatpush1.msra.mxu0 0.0
        %638 = vmatprep.subr.mxu0 0.0
        %639 = vmatpush1.msra.mxu0 0.0
        %640 = vmatprep.subr.mxu0 0.0
        %641 = vmatpush1.msra.mxu0 0.0
        %642 = vmatprep.subr.mxu0 0.0
        %643 = vmatpush1.msra.mxu0 0.0
        %644 = vmatprep.subr.mxu0 0.0
        %645 = vmatpush1.msra.mxu0 0.0
        %646 = vmatprep.subr.mxu0 0.0
        %647 = vmatpush1.msra.mxu0 0.0
        %648 = vmatprep.subr.mxu0 0.0
        %649 = vmatpush1.msra.mxu0 0.0
        %650 = vmatprep.subr.mxu0 0.0
        %651 = vmatpush1.msra.mxu0 0.0
        %652 = vmatprep.subr.mxu0 0.0
        %653 = vmatpush1.msra.mxu0 0.0
        %654 = vmatprep.subr.mxu0 0.0
        %655 = vmatpush1.msra.mxu0 0.0
        %656 = vmatprep.mubr.f32.mxu0 0.0
        %657 = vmatmul.mubr.f32.gmra.mrb[0].mxu0 %v574
        %v658 = vpop.f32.mrb[0].mxu0
        %v659 = vadd.f32 0.0, %v658
        %v660 = vpop.f32.mrb[0].mxu0
        %661 = vdwg.mxu0
        %v662 = vadd.f32 %v572, %v659
        %s663 = scalar_lea.vmem [#allocation2], 5
        %v664 = vld [vmem:[%s663] ss:$2 sm:$0xff]
        %s665 = scalar_lea.vmem [#allocation3], 640
        %v666 = vld [vmem:[%s665] sm:$0xff]
        %v667 = vld [vmem:[%s665 + $0x8] sm:$0xff]
        %v668 = vld [vmem:[%s665 + $0x10] sm:$0xff]
        %v669 = vld [vmem:[%s665 + $0x18] sm:$0xff]
        %v670 = vld [vmem:[%s665 + $0x20] sm:$0xff]
        %v671 = vld [vmem:[%s665 + $0x28] sm:$0xff]
        %v672 = vld [vmem:[%s665 + $0x30] sm:$0xff]
        %v673 = vld [vmem:[%s665 + $0x38] sm:$0xff]
        %v674 = vld [vmem:[%s665 + $0x40] sm:$0xff]
        %v675 = vld [vmem:[%s665 + $0x48] sm:$0xff]
        %v676 = vld [vmem:[%s665 + $0x50] sm:$0xff]
        %v677 = vld [vmem:[%s665 + $0x58] sm:$0xff]
        %v678 = vld [vmem:[%s665 + $0x60] sm:$0xff]
        %v679 = vld [vmem:[%s665 + $0x68] sm:$0xff]
        %v680 = vld [vmem:[%s665 + $0x70] sm:$0xff]
        %v681 = vld [vmem:[%s665 + $0x78] sm:$0xff]
        %682 = vmatprep.subr.mxu0 0.0
        %683 = vmatpush1.msra.mxu0 %v666
        %684 = vmatprep.subr.mxu0 0.0
        %685 = vmatpush1.msra.mxu0 %v667
        %686 = vmatprep.subr.mxu0 0.0
        %687 = vmatpush1.msra.mxu0 %v668
        %688 = vmatprep.subr.mxu0 0.0
        %689 = vmatpush1.msra.mxu0 %v669
        %690 = vmatprep.subr.mxu0 0.0
        %691 = vmatpush1.msra.mxu0 %v670
        %692 = vmatprep.subr.mxu0 0.0
        %693 = vmatpush1.msra.mxu0 %v671
        %694 = vmatprep.subr.mxu0 0.0
        %695 = vmatpush1.msra.mxu0 %v672
        %696 = vmatprep.subr.mxu0 0.0
        %697 = vmatpush1.msra.mxu0 %v673
        %698 = vmatprep.subr.mxu0 0.0
        %699 = vmatpush1.msra.mxu0 %v674
        %700 = vmatprep.subr.mxu0 0.0
        %701 = vmatpush1.msra.mxu0 %v675
        %702 = vmatprep.subr.mxu0 0.0
        %703 = vmatpush1.msra.mxu0 %v676
        %704 = vmatprep.subr.mxu0 0.0
        %705 = vmatpush1.msra.mxu0 %v677
        %706 = vmatprep.subr.mxu0 0.0
        %707 = vmatpush1.msra.mxu0 %v678
        %708 = vmatprep.subr.mxu0 0.0
        %709 = vmatpush1.msra.mxu0 %v679
        %710 = vmatprep.subr.mxu0 0.0
        %711 = vmatpush1.msra.mxu0 %v680
        %712 = vmatprep.subr.mxu0 0.0
        %713 = vmatpush1.msra.mxu0 %v681
        %714 = vmatprep.subr.mxu0 0.0
        %715 = vmatpush1.msra.mxu0 0.0
        %716 = vmatprep.subr.mxu0 0.0
        %717 = vmatpush1.msra.mxu0 0.0
        %718 = vmatprep.subr.mxu0 0.0
        %719 = vmatpush1.msra.mxu0 0.0
        %720 = vmatprep.subr.mxu0 0.0
        %721 = vmatpush1.msra.mxu0 0.0
        %722 = vmatprep.subr.mxu0 0.0
        %723 = vmatpush1.msra.mxu0 0.0
        %724 = vmatprep.subr.mxu0 0.0
        %725 = vmatpush1.msra.mxu0 0.0
        %726 = vmatprep.subr.mxu0 0.0
        %727 = vmatpush1.msra.mxu0 0.0
        %728 = vmatprep.subr.mxu0 0.0
        %729 = vmatpush1.msra.mxu0 0.0
        %730 = vmatprep.subr.mxu0 0.0
        %731 = vmatpush1.msra.mxu0 0.0
        %732 = vmatprep.subr.mxu0 0.0
        %733 = vmatpush1.msra.mxu0 0.0
        %734 = vmatprep.subr.mxu0 0.0
        %735 = vmatpush1.msra.mxu0 0.0
        %736 = vmatprep.subr.mxu0 0.0
        %737 = vmatpush1.msra.mxu0 0.0
        %738 = vmatprep.subr.mxu0 0.0
        %739 = vmatpush1.msra.mxu0 0.0
        %740 = vmatprep.subr.mxu0 0.0
        %741 = vmatpush1.msra.mxu0 0.0
        %742 = vmatprep.subr.mxu0 0.0
        %743 = vmatpush1.msra.mxu0 0.0
        %744 = vmatprep.subr.mxu0 0.0
        %745 = vmatpush1.msra.mxu0 0.0
        %746 = vmatprep.mubr.f32.mxu0 0.0
        %747 = vmatmul.mubr.f32.gmra.mrb[0].mxu0 %v664
        %v748 = vpop.f32.mrb[0].mxu0
        %v749 = vadd.f32 0.0, %v748
        %v750 = vpop.f32.mrb[0].mxu0
        %751 = vdwg.mxu0
        %v752 = vadd.f32 %v662, %v749
        %s753 = scalar_lea.vmem [#allocation2], 6
        %v754 = vld [vmem:[%s753] ss:$2 sm:$0xff]
        %s755 = scalar_lea.vmem [#allocation3], 768
        %v756 = vld [vmem:[%s755] sm:$0xff]
        %v757 = vld [vmem:[%s755 + $0x8] sm:$0xff]
        %v758 = vld [vmem:[%s755 + $0x10] sm:$0xff]
        %v759 = vld [vmem:[%s755 + $0x18] sm:$0xff]
        %v760 = vld [vmem:[%s755 + $0x20] sm:$0xff]
        %v761 = vld [vmem:[%s755 + $0x28] sm:$0xff]
        %v762 = vld [vmem:[%s755 + $0x30] sm:$0xff]
        %v763 = vld [vmem:[%s755 + $0x38] sm:$0xff]
        %v764 = vld [vmem:[%s755 + $0x40] sm:$0xff]
        %v765 = vld [vmem:[%s755 + $0x48] sm:$0xff]
        %v766 = vld [vmem:[%s755 + $0x50] sm:$0xff]
        %v767 = vld [vmem:[%s755 + $0x58] sm:$0xff]
        %v768 = vld [vmem:[%s755 + $0x60] sm:$0xff]
        %v769 = vld [vmem:[%s755 + $0x68] sm:$0xff]
        %v770 = vld [vmem:[%s755 + $0x70] sm:$0xff]
        %v771 = vld [vmem:[%s755 + $0x78] sm:$0xff]
        %772 = vmatprep.subr.mxu0 0.0
        %773 = vmatpush1.msra.mxu0 %v756
        %774 = vmatprep.subr.mxu0 0.0
        %775 = vmatpush1.msra.mxu0 %v757
        %776 = vmatprep.subr.mxu0 0.0
        %777 = vmatpush1.msra.mxu0 %v758
        %778 = vmatprep.subr.mxu0 0.0
        %779 = vmatpush1.msra.mxu0 %v759
        %780 = vmatprep.subr.mxu0 0.0
        %781 = vmatpush1.msra.mxu0 %v760
        %782 = vmatprep.subr.mxu0 0.0
        %783 = vmatpush1.msra.mxu0 %v761
        %784 = vmatprep.subr.mxu0 0.0
        %785 = vmatpush1.msra.mxu0 %v762
        %786 = vmatprep.subr.mxu0 0.0
        %787 = vmatpush1.msra.mxu0 %v763
        %788 = vmatprep.subr.mxu0 0.0
        %789 = vmatpush1.msra.mxu0 %v764
        %790 = vmatprep.subr.mxu0 0.0
        %791 = vmatpush1.msra.mxu0 %v765
        %792 = vmatprep.subr.mxu0 0.0
        %793 = vmatpush1.msra.mxu0 %v766
        %794 = vmatprep.subr.mxu0 0.0
        %795 = vmatpush1.msra.mxu0 %v767
        %796 = vmatprep.subr.mxu0 0.0
        %797 = vmatpush1.msra.mxu0 %v768
        %798 = vmatprep.subr.mxu0 0.0
        %799 = vmatpush1.msra.mxu0 %v769
        %800 = vmatprep.subr.mxu0 0.0
        %801 = vmatpush1.msra.mxu0 %v770
        %802 = vmatprep.subr.mxu0 0.0
        %803 = vmatpush1.msra.mxu0 %v771
        %804 = vmatprep.subr.mxu0 0.0
        %805 = vmatpush1.msra.mxu0 0.0
        %806 = vmatprep.subr.mxu0 0.0
        %807 = vmatpush1.msra.mxu0 0.0
        %808 = vmatprep.subr.mxu0 0.0
        %809 = vmatpush1.msra.mxu0 0.0
        %810 = vmatprep.subr.mxu0 0.0
        %811 = vmatpush1.msra.mxu0 0.0
        %812 = vmatprep.subr.mxu0 0.0
        %813 = vmatpush1.msra.mxu0 0.0
        %814 = vmatprep.subr.mxu0 0.0
        %815 = vmatpush1.msra.mxu0 0.0
        %816 = vmatprep.subr.mxu0 0.0
        %817 = vmatpush1.msra.mxu0 0.0
        %818 = vmatprep.subr.mxu0 0.0
        %819 = vmatpush1.msra.mxu0 0.0
        %820 = vmatprep.subr.mxu0 0.0
        %821 = vmatpush1.msra.mxu0 0.0
        %822 = vmatprep.subr.mxu0 0.0
        %823 = vmatpush1.msra.mxu0 0.0
        %824 = vmatprep.subr.mxu0 0.0
        %825 = vmatpush1.msra.mxu0 0.0
        %826 = vmatprep.subr.mxu0 0.0
        %827 = vmatpush1.msra.mxu0 0.0
        %828 = vmatprep.subr.mxu0 0.0
        %829 = vmatpush1.msra.mxu0 0.0
        %830 = vmatprep.subr.mxu0 0.0
        %831 = vmatpush1.msra.mxu0 0.0
        %832 = vmatprep.subr.mxu0 0.0
        %833 = vmatpush1.msra.mxu0 0.0
        %834 = vmatprep.subr.mxu0 0.0
        %835 = vmatpush1.msra.mxu0 0.0
        %836 = vmatprep.mubr.f32.mxu0 0.0
        %837 = vmatmul.mubr.f32.gmra.mrb[0].mxu0 %v754
        %v838 = vpop.f32.mrb[0].mxu0
        %v839 = vadd.f32 0.0, %v838
        %v840 = vpop.f32.mrb[0].mxu0
        %841 = vdwg.mxu0
        %v842 = vadd.f32 %v752, %v839
        %v843 = vld [vmem:[%s210] ss:$2 sm:$0xff]
        %v844 = vadd.f32 %v843, %v842
        %v845 = vld [vmem:[%s2] sm:$0xff]
        %v846 = vld [vmem:[%s2 + $0x8] sm:$0xff]
        %v847 = vld [vmem:[%s2 + $0x10] sm:$0xff]
        %v848 = vld [vmem:[%s2 + $0x18] sm:$0xff]
        %v849 = vld [vmem:[%s2 + $0x20] sm:$0xff]
        %v850 = vld [vmem:[%s2 + $0x28] sm:$0xff]
        %v851 = vld [vmem:[%s2 + $0x30] sm:$0xff]
        %v852 = vld [vmem:[%s2 + $0x38] sm:$0xff]
        %v853 = vld [vmem:[%s2 + $0x40] sm:$0xff]
        %v854 = vld [vmem:[%s2 + $0x48] sm:$0xff]
        %v855 = vld [vmem:[%s2 + $0x50] sm:$0xff]
        %v856 = vld [vmem:[%s2 + $0x58] sm:$0xff]
        %v857 = vld [vmem:[%s2 + $0x60] sm:$0xff]
        %v858 = vld [vmem:[%s2 + $0x68] sm:$0xff]
        %v859 = vld [vmem:[%s2 + $0x70] sm:$0xff]
        %v860 = vld [vmem:[%s2 + $0x78] sm:$0xff]
        %861 = vmatprep.subr.mxu0 0.0
        %862 = vmatpush1.msra.mxu0 %v237
        %863 = vmatprep.subr.mxu0 0.0
        %864 = vmatpush1.msra.mxu0 %v238
        %865 = vmatprep.subr.mxu0 0.0
        %866 = vmatpush1.msra.mxu0 %v239
        %867 = vmatprep.subr.mxu0 0.0
        %868 = vmatpush1.msra.mxu0 %v240
        %869 = vmatprep.subr.mxu0 0.0
        %870 = vmatpush1.msra.mxu0 %v241
        %871 = vmatprep.subr.mxu0 0.0
        %872 = vmatpush1.msra.mxu0 %v242
        %873 = vmatprep.subr.mxu0 0.0
        %874 = vmatpush1.msra.mxu0 %v243
        %875 = vmatprep.subr.mxu0 0.0
        %876 = vmatpush1.msra.mxu0 %v244
        %877 = vmatprep.subr.mxu0 0.0
        %878 = vmatpush1.msra.mxu0 %v245
        %879 = vmatprep.subr.mxu0 0.0
        %880 = vmatpush1.msra.mxu0 %v246
        %881 = vmatprep.subr.mxu0 0.0
        %882 = vmatpush1.msra.mxu0 %v247
        %883 = vmatprep.subr.mxu0 0.0
        %884 = vmatpush1.msra.mxu0 %v248
        %885 = vmatprep.subr.mxu0 0.0
        %886 = vmatpush1.msra.mxu0 %v249
        %887 = vmatprep.subr.mxu0 0.0
        %888 = vmatpush1.msra.mxu0 %v250
        %889 = vmatprep.subr.mxu0 0.0
        %890 = vmatpush1.msra.mxu0 %v251
        %891 = vmatprep.subr.mxu0 0.0
        %892 = vmatpush1.msra.mxu0 %v252
        %893 = vmatprep.subr.mxu0 0.0
        %894 = vmatpush1.msra.mxu0 0.0
        %895 = vmatprep.subr.mxu0 0.0
        %896 = vmatpush1.msra.mxu0 0.0
        %897 = vmatprep.subr.mxu0 0.0
        %898 = vmatpush1.msra.mxu0 0.0
        %899 = vmatprep.subr.mxu0 0.0
        %900 = vmatpush1.msra.mxu0 0.0
        %901 = vmatprep.subr.mxu0 0.0
        %902 = vmatpush1.msra.mxu0 0.0
        %903 = vmatprep.subr.mxu0 0.0
        %904 = vmatpush1.msra.mxu0 0.0
        %905 = vmatprep.subr.mxu0 0.0
        %906 = vmatpush1.msra.mxu0 0.0
        %907 = vmatprep.subr.mxu0 0.0
        %908 = vmatpush1.msra.mxu0 0.0
        %909 = vmatprep.subr.mxu0 0.0
        %910 = vmatpush1.msra.mxu0 0.0
        %911 = vmatprep.subr.mxu0 0.0
        %912 = vmatpush1.msra.mxu0 0.0
        %913 = vmatprep.subr.mxu0 0.0
        %914 = vmatpush1.msra.mxu0 0.0
        %915 = vmatprep.subr.mxu0 0.0
        %916 = vmatpush1.msra.mxu0 0.0
        %917 = vmatprep.subr.mxu0 0.0
        %918 = vmatpush1.msra.mxu0 0.0
        %919 = vmatprep.subr.mxu0 0.0
        %920 = vmatpush1.msra.mxu0 0.0
        %921 = vmatprep.subr.mxu0 0.0
        %922 = vmatpush1.msra.mxu0 0.0
        %923 = vmatprep.subr.mxu0 0.0
        %924 = vmatpush1.msra.mxu0 0.0
        %925 = vmatprep.mubr.f32.mxu0 0.0
        %926 = vmatmul.mubr.f32.gmra.mrb[0].mxu0 %v394
        %v927 = vpop.f32.mrb[0].mxu0
        %v928 = vadd.f32 0.0, %v927
        %v929 = vpop.f32.mrb[0].mxu0
        %930 = vdwg.mxu0
        %931 = vmatprep.subr.mxu0 0.0
        %932 = vmatpush1.msra.mxu0 %v218
        %933 = vmatprep.subr.mxu0 0.0
        %934 = vmatpush1.msra.mxu0 %v219
        %935 = vmatprep.subr.mxu0 0.0
        %936 = vmatpush1.msra.mxu0 %v220
        %937 = vmatprep.subr.mxu0 0.0
        %938 = vmatpush1.msra.mxu0 %v221
        %939 = vmatprep.subr.mxu0 0.0
        %940 = vmatpush1.msra.mxu0 %v222
        %941 = vmatprep.subr.mxu0 0.0
        %942 = vmatpush1.msra.mxu0 %v223
        %943 = vmatprep.subr.mxu0 0.0
        %944 = vmatpush1.msra.mxu0 %v224
        %945 = vmatprep.subr.mxu0 0.0
        %946 = vmatpush1.msra.mxu0 %v225
        %947 = vmatprep.subr.mxu0 0.0
        %948 = vmatpush1.msra.mxu0 %v226
        %949 = vmatprep.subr.mxu0 0.0
        %950 = vmatpush1.msra.mxu0 %v227
        %951 = vmatprep.subr.mxu0 0.0
        %952 = vmatpush1.msra.mxu0 %v228
        %953 = vmatprep.subr.mxu0 0.0
        %954 = vmatpush1.msra.mxu0 %v229
        %955 = vmatprep.subr.mxu0 0.0
        %956 = vmatpush1.msra.mxu0 %v230
        %957 = vmatprep.subr.mxu0 0.0
        %958 = vmatpush1.msra.mxu0 %v231
        %959 = vmatprep.subr.mxu0 0.0
        %960 = vmatpush1.msra.mxu0 %v232
        %961 = vmatprep.subr.mxu0 0.0
        %962 = vmatpush1.msra.mxu0 %v233
        %963 = vmatprep.subr.mxu0 0.0
        %964 = vmatpush1.msra.mxu0 0.0
        %965 = vmatprep.subr.mxu0 0.0
        %966 = vmatpush1.msra.mxu0 0.0
        %967 = vmatprep.subr.mxu0 0.0
        %968 = vmatpush1.msra.mxu0 0.0
        %969 = vmatprep.subr.mxu0 0.0
        %970 = vmatpush1.msra.mxu0 0.0
        %971 = vmatprep.subr.mxu0 0.0
        %972 = vmatpush1.msra.mxu0 0.0
        %973 = vmatprep.subr.mxu0 0.0
        %974 = vmatpush1.msra.mxu0 0.0
        %975 = vmatprep.subr.mxu0 0.0
        %976 = vmatpush1.msra.mxu0 0.0
        %977 = vmatprep.subr.mxu0 0.0
        %978 = vmatpush1.msra.mxu0 0.0
        %979 = vmatprep.subr.mxu0 0.0
        %980 = vmatpush1.msra.mxu0 0.0
        %981 = vmatprep.subr.mxu0 0.0
        %982 = vmatpush1.msra.mxu0 0.0
        %983 = vmatprep.subr.mxu0 0.0
        %984 = vmatpush1.msra.mxu0 0.0
        %985 = vmatprep.subr.mxu0 0.0
        %986 = vmatpush1.msra.mxu0 0.0
        %987 = vmatprep.subr.mxu0 0.0
        %988 = vmatpush1.msra.mxu0 0.0
        %989 = vmatprep.subr.mxu0 0.0
        %990 = vmatpush1.msra.mxu0 0.0
        %991 = vmatprep.subr.mxu0 0.0
        %992 = vmatpush1.msra.mxu0 0.0
        %993 = vmatprep.subr.mxu0 0.0
        %994 = vmatpush1.msra.mxu0 0.0
        %995 = vmatprep.mubr.f32.mxu0 0.0
        %996 = vmatmul.mubr.f32.gmra.mrb[0].mxu0 %v235
        %v997 = vpop.f32.mrb[0].mxu0
        %v998 = vadd.f32 %v928, %v997
        %v999 = vpop.f32.mrb[0].mxu0
        %1000 = vdwg.mxu0
        %1001 = vmatprep.subr.mxu0 0.0
        %1002 = vmatpush1.msra.mxu0 %v396
        %1003 = vmatprep.subr.mxu0 0.0
        %1004 = vmatpush1.msra.mxu0 %v397
        %1005 = vmatprep.subr.mxu0 0.0
        %1006 = vmatpush1.msra.mxu0 %v398
        %1007 = vmatprep.subr.mxu0 0.0
        %1008 = vmatpush1.msra.mxu0 %v399
        %1009 = vmatprep.subr.mxu0 0.0
        %1010 = vmatpush1.msra.mxu0 %v400
        %1011 = vmatprep.subr.mxu0 0.0
        %1012 = vmatpush1.msra.mxu0 %v401
        %1013 = vmatprep.subr.mxu0 0.0
        %1014 = vmatpush1.msra.mxu0 %v402
        %1015 = vmatprep.subr.mxu0 0.0
        %1016 = vmatpush1.msra.mxu0 %v403
        %1017 = vmatprep.subr.mxu0 0.0
        %1018 = vmatpush1.msra.mxu0 %v404
        %1019 = vmatprep.subr.mxu0 0.0
        %1020 = vmatpush1.msra.mxu0 %v405
        %1021 = vmatprep.subr.mxu0 0.0
        %1022 = vmatpush1.msra.mxu0 %v406
        %1023 = vmatprep.subr.mxu0 0.0
        %1024 = vmatpush1.msra.mxu0 %v407
        %1025 = vmatprep.subr.mxu0 0.0
        %1026 = vmatpush1.msra.mxu0 %v408
        %1027 = vmatprep.subr.mxu0 0.0
        %1028 = vmatpush1.msra.mxu0 %v409
        %1029 = vmatprep.subr.mxu0 0.0
        %1030 = vmatpush1.msra.mxu0 %v410
        %1031 = vmatprep.subr.mxu0 0.0
        %1032 = vmatpush1.msra.mxu0 %v411
        %1033 = vmatprep.subr.mxu0 0.0
        %1034 = vmatpush1.msra.mxu0 0.0
        %1035 = vmatprep.subr.mxu0 0.0
        %1036 = vmatpush1.msra.mxu0 0.0
        %1037 = vmatprep.subr.mxu0 0.0
        %1038 = vmatpush1.msra.mxu0 0.0
        %1039 = vmatprep.subr.mxu0 0.0
        %1040 = vmatpush1.msra.mxu0 0.0
        %1041 = vmatprep.subr.mxu0 0.0
        %1042 = vmatpush1.msra.mxu0 0.0
        %1043 = vmatprep.subr.mxu0 0.0
        %1044 = vmatpush1.msra.mxu0 0.0
        %1045 = vmatprep.subr.mxu0 0.0
        %1046 = vmatpush1.msra.mxu0 0.0
        %1047 = vmatprep.subr.mxu0 0.0
        %1048 = vmatpush1.msra.mxu0 0.0
        %1049 = vmatprep.subr.mxu0 0.0
        %1050 = vmatpush1.msra.mxu0 0.0
        %1051 = vmatprep.subr.mxu0 0.0
        %1052 = vmatpush1.msra.mxu0 0.0
        %1053 = vmatprep.subr.mxu0 0.0
        %1054 = vmatpush1.msra.mxu0 0.0
        %1055 = vmatprep.subr.mxu0 0.0
        %1056 = vmatpush1.msra.mxu0 0.0
        %1057 = vmatprep.subr.mxu0 0.0
        %1058 = vmatpush1.msra.mxu0 0.0
        %1059 = vmatprep.subr.mxu0 0.0
        %1060 = vmatpush1.msra.mxu0 0.0
        %1061 = vmatprep.subr.mxu0 0.0
        %1062 = vmatpush1.msra.mxu0 0.0
        %1063 = vmatprep.subr.mxu0 0.0
        %1064 = vmatpush1.msra.mxu0 0.0
        %1065 = vmatprep.mubr.f32.mxu0 0.0
        %1066 = vmatmul.mubr.f32.gmra.mrb[0].mxu0 %v484
        %v1067 = vpop.f32.mrb[0].mxu0
        %v1068 = vadd.f32 0.0, %v1067
        %v1069 = vpop.f32.mrb[0].mxu0
        %1070 = vdwg.mxu0
        %v1071 = vadd.f32 %v998, %v1068
        %1072 = vmatprep.subr.mxu0 0.0
        %1073 = vmatpush1.msra.mxu0 %v486
        %1074 = vmatprep.subr.mxu0 0.0
        %1075 = vmatpush1.msra.mxu0 %v487
        %1076 = vmatprep.subr.mxu0 0.0
        %1077 = vmatpush1.msra.mxu0 %v488
        %1078 = vmatprep.subr.mxu0 0.0
        %1079 = vmatpush1.msra.mxu0 %v489
        %1080 = vmatprep.subr.mxu0 0.0
        %1081 = vmatpush1.msra.mxu0 %v490
        %1082 = vmatprep.subr.mxu0 0.0
        %1083 = vmatpush1.msra.mxu0 %v491
        %1084 = vmatprep.subr.mxu0 0.0
        %1085 = vmatpush1.msra.mxu0 %v492
        %1086 = vmatprep.subr.mxu0 0.0
        %1087 = vmatpush1.msra.mxu0 %v493
        %1088 = vmatprep.subr.mxu0 0.0
        %1089 = vmatpush1.msra.mxu0 %v494
        %1090 = vmatprep.subr.mxu0 0.0
        %1091 = vmatpush1.msra.mxu0 %v495
        %1092 = vmatprep.subr.mxu0 0.0
        %1093 = vmatpush1.msra.mxu0 %v496
        %1094 = vmatprep.subr.mxu0 0.0
        %1095 = vmatpush1.msra.mxu0 %v497
        %1096 = vmatprep.subr.mxu0 0.0
        %1097 = vmatpush1.msra.mxu0 %v498
        %1098 = vmatprep.subr.mxu0 0.0
        %1099 = vmatpush1.msra.mxu0 %v499
        %1100 = vmatprep.subr.mxu0 0.0
        %1101 = vmatpush1.msra.mxu0 %v500
        %1102 = vmatprep.subr.mxu0 0.0
        %1103 = vmatpush1.msra.mxu0 %v501
        %1104 = vmatprep.subr.mxu0 0.0
        %1105 = vmatpush1.msra.mxu0 0.0
        %1106 = vmatprep.subr.mxu0 0.0
        %1107 = vmatpush1.msra.mxu0 0.0
        %1108 = vmatprep.subr.mxu0 0.0
        %1109 = vmatpush1.msra.mxu0 0.0
        %1110 = vmatprep.subr.mxu0 0.0
        %1111 = vmatpush1.msra.mxu0 0.0
        %1112 = vmatprep.subr.mxu0 0.0
        %1113 = vmatpush1.msra.mxu0 0.0
        %1114 = vmatprep.subr.mxu0 0.0
        %1115 = vmatpush1.msra.mxu0 0.0
        %1116 = vmatprep.subr.mxu0 0.0
        %1117 = vmatpush1.msra.mxu0 0.0
        %1118 = vmatprep.subr.mxu0 0.0
        %1119 = vmatpush1.msra.mxu0 0.0
        %1120 = vmatprep.subr.mxu0 0.0
        %1121 = vmatpush1.msra.mxu0 0.0
        %1122 = vmatprep.subr.mxu0 0.0
        %1123 = vmatpush1.msra.mxu0 0.0
        %1124 = vmatprep.subr.mxu0 0.0
        %1125 = vmatpush1.msra.mxu0 0.0
        %1126 = vmatprep.subr.mxu0 0.0
        %1127 = vmatpush1.msra.mxu0 0.0
        %1128 = vmatprep.subr.mxu0 0.0
        %1129 = vmatpush1.msra.mxu0 0.0
        %1130 = vmatprep.subr.mxu0 0.0
        %1131 = vmatpush1.msra.mxu0 0.0
        %1132 = vmatprep.subr.mxu0 0.0
        %1133 = vmatpush1.msra.mxu0 0.0
        %1134 = vmatprep.subr.mxu0 0.0
        %1135 = vmatpush1.msra.mxu0 0.0
        %1136 = vmatprep.mubr.f32.mxu0 0.0
        %1137 = vmatmul.mubr.f32.gmra.mrb[0].mxu0 %v574
        %v1138 = vpop.f32.mrb[0].mxu0
        %v1139 = vadd.f32 0.0, %v1138
        %v1140 = vpop.f32.mrb[0].mxu0
        %1141 = vdwg.mxu0
        %v1142 = vadd.f32 %v1071, %v1139
        %1143 = vmatprep.subr.mxu0 0.0
        %1144 = vmatpush1.msra.mxu0 %v576
        %1145 = vmatprep.subr.mxu0 0.0
        %1146 = vmatpush1.msra.mxu0 %v577
        %1147 = vmatprep.subr.mxu0 0.0
        %1148 = vmatpush1.msra.mxu0 %v578
        %1149 = vmatprep.subr.mxu0 0.0
        %1150 = vmatpush1.msra.mxu0 %v579
        %1151 = vmatprep.subr.mxu0 0.0
        %1152 = vmatpush1.msra.mxu0 %v580
        %1153 = vmatprep.subr.mxu0 0.0
        %1154 = vmatpush1.msra.mxu0 %v581
        %1155 = vmatprep.subr.mxu0 0.0
        %1156 = vmatpush1.msra.mxu0 %v582
        %1157 = vmatprep.subr.mxu0 0.0
        %1158 = vmatpush1.msra.mxu0 %v583
        %1159 = vmatprep.subr.mxu0 0.0
        %1160 = vmatpush1.msra.mxu0 %v584
        %1161 = vmatprep.subr.mxu0 0.0
        %1162 = vmatpush1.msra.mxu0 %v585
        %1163 = vmatprep.subr.mxu0 0.0
        %1164 = vmatpush1.msra.mxu0 %v586
        %1165 = vmatprep.subr.mxu0 0.0
        %1166 = vmatpush1.msra.mxu0 %v587
        %1167 = vmatprep.subr.mxu0 0.0
        %1168 = vmatpush1.msra.mxu0 %v588
        %1169 = vmatprep.subr.mxu0 0.0
        %1170 = vmatpush1.msra.mxu0 %v589
        %1171 = vmatprep.subr.mxu0 0.0
        %1172 = vmatpush1.msra.mxu0 %v590
        %1173 = vmatprep.subr.mxu0 0.0
        %1174 = vmatpush1.msra.mxu0 %v591
        %1175 = vmatprep.subr.mxu0 0.0
        %1176 = vmatpush1.msra.mxu0 0.0
        %1177 = vmatprep.subr.mxu0 0.0
        %1178 = vmatpush1.msra.mxu0 0.0
        %1179 = vmatprep.subr.mxu0 0.0
        %1180 = vmatpush1.msra.mxu0 0.0
        %1181 = vmatprep.subr.mxu0 0.0
        %1182 = vmatpush1.msra.mxu0 0.0
        %1183 = vmatprep.subr.mxu0 0.0
        %1184 = vmatpush1.msra.mxu0 0.0
        %1185 = vmatprep.subr.mxu0 0.0
        %1186 = vmatpush1.msra.mxu0 0.0
        %1187 = vmatprep.subr.mxu0 0.0
        %1188 = vmatpush1.msra.mxu0 0.0
        %1189 = vmatprep.subr.mxu0 0.0
        %1190 = vmatpush1.msra.mxu0 0.0
        %1191 = vmatprep.subr.mxu0 0.0
        %1192 = vmatpush1.msra.mxu0 0.0
        %1193 = vmatprep.subr.mxu0 0.0
        %1194 = vmatpush1.msra.mxu0 0.0
        %1195 = vmatprep.subr.mxu0 0.0
        %1196 = vmatpush1.msra.mxu0 0.0
        %1197 = vmatprep.subr.mxu0 0.0
        %1198 = vmatpush1.msra.mxu0 0.0
        %1199 = vmatprep.subr.mxu0 0.0
        %1200 = vmatpush1.msra.mxu0 0.0
        %1201 = vmatprep.subr.mxu0 0.0
        %1202 = vmatpush1.msra.mxu0 0.0
        %1203 = vmatprep.subr.mxu0 0.0
        %1204 = vmatpush1.msra.mxu0 0.0
        %1205 = vmatprep.subr.mxu0 0.0
        %1206 = vmatpush1.msra.mxu0 0.0
        %1207 = vmatprep.mubr.f32.mxu0 0.0
        %1208 = vmatmul.mubr.f32.gmra.mrb[0].mxu0 %v664
        %v1209 = vpop.f32.mrb[0].mxu0
        %v1210 = vadd.f32 0.0, %v1209
        %v1211 = vpop.f32.mrb[0].mxu0
        %1212 = vdwg.mxu0
        %v1213 = vadd.f32 %v1142, %v1210
        %1214 = vmatprep.subr.mxu0 0.0
        %1215 = vmatpush1.msra.mxu0 %v666
        %1216 = vmatprep.subr.mxu0 0.0
        %1217 = vmatpush1.msra.mxu0 %v667
        %1218 = vmatprep.subr.mxu0 0.0
        %1219 = vmatpush1.msra.mxu0 %v668
        %1220 = vmatprep.subr.mxu0 0.0
        %1221 = vmatpush1.msra.mxu0 %v669
        %1222 = vmatprep.subr.mxu0 0.0
        %1223 = vmatpush1.msra.mxu0 %v670
        %1224 = vmatprep.subr.mxu0 0.0
        %1225 = vmatpush1.msra.mxu0 %v671
        %1226 = vmatprep.subr.mxu0 0.0
        %1227 = vmatpush1.msra.mxu0 %v672
        %1228 = vmatprep.subr.mxu0 0.0
        %1229 = vmatpush1.msra.mxu0 %v673
        %1230 = vmatprep.subr.mxu0 0.0
        %1231 = vmatpush1.msra.mxu0 %v674
        %1232 = vmatprep.subr.mxu0 0.0
        %1233 = vmatpush1.msra.mxu0 %v675
        %1234 = vmatprep.subr.mxu0 0.0
        %1235 = vmatpush1.msra.mxu0 %v676
        %1236 = vmatprep.subr.mxu0 0.0
        %1237 = vmatpush1.msra.mxu0 %v677
        %1238 = vmatprep.subr.mxu0 0.0
        %1239 = vmatpush1.msra.mxu0 %v678
        %1240 = vmatprep.subr.mxu0 0.0
        %1241 = vmatpush1.msra.mxu0 %v679
        %1242 = vmatprep.subr.mxu0 0.0
        %1243 = vmatpush1.msra.mxu0 %v680
        %1244 = vmatprep.subr.mxu0 0.0
        %1245 = vmatpush1.msra.mxu0 %v681
        %1246 = vmatprep.subr.mxu0 0.0
        %1247 = vmatpush1.msra.mxu0 0.0
        %1248 = vmatprep.subr.mxu0 0.0
        %1249 = vmatpush1.msra.mxu0 0.0
        %1250 = vmatprep.subr.mxu0 0.0
        %1251 = vmatpush1.msra.mxu0 0.0
        %1252 = vmatprep.subr.mxu0 0.0
        %1253 = vmatpush1.msra.mxu0 0.0
        %1254 = vmatprep.subr.mxu0 0.0
        %1255 = vmatpush1.msra.mxu0 0.0
        %1256 = vmatprep.subr.mxu0 0.0
        %1257 = vmatpush1.msra.mxu0 0.0
        %1258 = vmatprep.subr.mxu0 0.0
        %1259 = vmatpush1.msra.mxu0 0.0
        %1260 = vmatprep.subr.mxu0 0.0
        %1261 = vmatpush1.msra.mxu0 0.0
        %1262 = vmatprep.subr.mxu0 0.0
        %1263 = vmatpush1.msra.mxu0 0.0
        %1264 = vmatprep.subr.mxu0 0.0
        %1265 = vmatpush1.msra.mxu0 0.0
        %1266 = vmatprep.subr.mxu0 0.0
        %1267 = vmatpush1.msra.mxu0 0.0
        %1268 = vmatprep.subr.mxu0 0.0
        %1269 = vmatpush1.msra.mxu0 0.0
        %1270 = vmatprep.subr.mxu0 0.0
        %1271 = vmatpush1.msra.mxu0 0.0
        %1272 = vmatprep.subr.mxu0 0.0
        %1273 = vmatpush1.msra.mxu0 0.0
        %1274 = vmatprep.subr.mxu0 0.0
        %1275 = vmatpush1.msra.mxu0 0.0
        %1276 = vmatprep.subr.mxu0 0.0
        %1277 = vmatpush1.msra.mxu0 0.0
        %1278 = vmatprep.mubr.f32.mxu0 0.0
        %1279 = vmatmul.mubr.f32.gmra.mrb[0].mxu0 %v754
        %v1280 = vpop.f32.mrb[0].mxu0
        %v1281 = vadd.f32 0.0, %v1280
        %v1282 = vpop.f32.mrb[0].mxu0
        %1283 = vdwg.mxu0
        %v1284 = vadd.f32 %v1213, %v1281
        %s1285 = scalar_lea.vmem [#allocation2], 7
        %v1286 = vld [vmem:[%s1285] ss:$2 sm:$0xff]
        %1287 = vmatprep.subr.mxu0 0.0
        %1288 = vmatpush1.msra.mxu0 %v756
        %1289 = vmatprep.subr.mxu0 0.0
        %1290 = vmatpush1.msra.mxu0 %v757
        %1291 = vmatprep.subr.mxu0 0.0
        %1292 = vmatpush1.msra.mxu0 %v758
        %1293 = vmatprep.subr.mxu0 0.0
        %1294 = vmatpush1.msra.mxu0 %v759
        %1295 = vmatprep.subr.mxu0 0.0
        %1296 = vmatpush1.msra.mxu0 %v760
        %1297 = vmatprep.subr.mxu0 0.0
        %1298 = vmatpush1.msra.mxu0 %v761
        %1299 = vmatprep.subr.mxu0 0.0
        %1300 = vmatpush1.msra.mxu0 %v762
        %1301 = vmatprep.subr.mxu0 0.0
        %1302 = vmatpush1.msra.mxu0 %v763
        %1303 = vmatprep.subr.mxu0 0.0
        %1304 = vmatpush1.msra.mxu0 %v764
        %1305 = vmatprep.subr.mxu0 0.0
        %1306 = vmatpush1.msra.mxu0 %v765
        %1307 = vmatprep.subr.mxu0 0.0
        %1308 = vmatpush1.msra.mxu0 %v766
        %1309 = vmatprep.subr.mxu0 0.0
        %1310 = vmatpush1.msra.mxu0 %v767
        %1311 = vmatprep.subr.mxu0 0.0
        %1312 = vmatpush1.msra.mxu0 %v768
        %1313 = vmatprep.subr.mxu0 0.0
        %1314 = vmatpush1.msra.mxu0 %v769
        %1315 = vmatprep.subr.mxu0 0.0
        %1316 = vmatpush1.msra.mxu0 %v770
        %1317 = vmatprep.subr.mxu0 0.0
        %1318 = vmatpush1.msra.mxu0 %v771
        %1319 = vmatprep.subr.mxu0 0.0
        %1320 = vmatpush1.msra.mxu0 0.0
        %1321 = vmatprep.subr.mxu0 0.0
        %1322 = vmatpush1.msra.mxu0 0.0
        %1323 = vmatprep.subr.mxu0 0.0
        %1324 = vmatpush1.msra.mxu0 0.0
        %1325 = vmatprep.subr.mxu0 0.0
        %1326 = vmatpush1.msra.mxu0 0.0
        %1327 = vmatprep.subr.mxu0 0.0
        %1328 = vmatpush1.msra.mxu0 0.0
        %1329 = vmatprep.subr.mxu0 0.0
        %1330 = vmatpush1.msra.mxu0 0.0
        %1331 = vmatprep.subr.mxu0 0.0
        %1332 = vmatpush1.msra.mxu0 0.0
        %1333 = vmatprep.subr.mxu0 0.0
        %1334 = vmatpush1.msra.mxu0 0.0
        %1335 = vmatprep.subr.mxu0 0.0
        %1336 = vmatpush1.msra.mxu0 0.0
        %1337 = vmatprep.subr.mxu0 0.0
        %1338 = vmatpush1.msra.mxu0 0.0
        %1339 = vmatprep.subr.mxu0 0.0
        %1340 = vmatpush1.msra.mxu0 0.0
        %1341 = vmatprep.subr.mxu0 0.0
        %1342 = vmatpush1.msra.mxu0 0.0
        %1343 = vmatprep.subr.mxu0 0.0
        %1344 = vmatpush1.msra.mxu0 0.0
        %1345 = vmatprep.subr.mxu0 0.0
        %1346 = vmatpush1.msra.mxu0 0.0
        %1347 = vmatprep.subr.mxu0 0.0
        %1348 = vmatpush1.msra.mxu0 0.0
        %1349 = vmatprep.subr.mxu0 0.0
        %1350 = vmatpush1.msra.mxu0 0.0
        %1351 = vmatprep.mubr.f32.mxu0 0.0
        %1352 = vmatmul.mubr.f32.gmra.mrb[0].mxu0 %v1286
        %v1353 = vpop.f32.mrb[0].mxu0
        %v1354 = vadd.f32 0.0, %v1353
        %v1355 = vpop.f32.mrb[0].mxu0
        %1356 = vdwg.mxu0
        %v1357 = vadd.f32 %v1284, %v1354
        %s1358 = scalar_lea.vmem %s210, 1
        %v1359 = vld [vmem:[%s1358] ss:$2 sm:$0xff]
        %v1360 = vadd.f32 %v1359, %v1357
        %s1361 = scalar_lea.vmem %s2, 128
        %v1362 = vld [vmem:[%s1361] sm:$0xff]
        %v1363 = vld [vmem:[%s1361 + $0x8] sm:$0xff]
        %v1364 = vld [vmem:[%s1361 + $0x10] sm:$0xff]
        %v1365 = vld [vmem:[%s1361 + $0x18] sm:$0xff]
        %v1366 = vld [vmem:[%s1361 + $0x20] sm:$0xff]
        %v1367 = vld [vmem:[%s1361 + $0x28] sm:$0xff]
        %v1368 = vld [vmem:[%s1361 + $0x30] sm:$0xff]
        %v1369 = vld [vmem:[%s1361 + $0x38] sm:$0xff]
        %v1370 = vld [vmem:[%s1361 + $0x40] sm:$0xff]
        %v1371 = vld [vmem:[%s1361 + $0x48] sm:$0xff]
        %v1372 = vld [vmem:[%s1361 + $0x50] sm:$0xff]
        %v1373 = vld [vmem:[%s1361 + $0x58] sm:$0xff]
        %v1374 = vld [vmem:[%s1361 + $0x60] sm:$0xff]
        %v1375 = vld [vmem:[%s1361 + $0x68] sm:$0xff]
        %v1376 = vld [vmem:[%s1361 + $0x70] sm:$0xff]
        %v1377 = vld [vmem:[%s1361 + $0x78] sm:$0xff]
        %1378 = vmatprep.subr.mxu0 0.0
        %1379 = vmatpush1.msra.mxu0 %v1362
        %1380 = vmatprep.subr.mxu0 0.0
        %1381 = vmatpush1.msra.mxu0 %v1363
        %1382 = vmatprep.subr.mxu0 0.0
        %1383 = vmatpush1.msra.mxu0 %v1364
        %1384 = vmatprep.subr.mxu0 0.0
        %1385 = vmatpush1.msra.mxu0 %v1365
        %1386 = vmatprep.subr.mxu0 0.0
        %1387 = vmatpush1.msra.mxu0 %v1366
        %1388 = vmatprep.subr.mxu0 0.0
        %1389 = vmatpush1.msra.mxu0 %v1367
        %1390 = vmatprep.subr.mxu0 0.0
        %1391 = vmatpush1.msra.mxu0 %v1368
        %1392 = vmatprep.subr.mxu0 0.0
        %1393 = vmatpush1.msra.mxu0 %v1369
        %1394 = vmatprep.subr.mxu0 0.0
        %1395 = vmatpush1.msra.mxu0 %v1370
        %1396 = vmatprep.subr.mxu0 0.0
        %1397 = vmatpush1.msra.mxu0 %v1371
        %1398 = vmatprep.subr.mxu0 0.0
        %1399 = vmatpush1.msra.mxu0 %v1372
        %1400 = vmatprep.subr.mxu0 0.0
        %1401 = vmatpush1.msra.mxu0 %v1373
        %1402 = vmatprep.subr.mxu0 0.0
        %1403 = vmatpush1.msra.mxu0 %v1374
        %1404 = vmatprep.subr.mxu0 0.0
        %1405 = vmatpush1.msra.mxu0 %v1375
        %1406 = vmatprep.subr.mxu0 0.0
        %1407 = vmatpush1.msra.mxu0 %v1376
        %1408 = vmatprep.subr.mxu0 0.0
        %1409 = vmatpush1.msra.mxu0 %v1377
        %1410 = vmatprep.subr.mxu0 0.0
        %1411 = vmatpush1.msra.mxu0 0.0
        %1412 = vmatprep.subr.mxu0 0.0
        %1413 = vmatpush1.msra.mxu0 0.0
        %1414 = vmatprep.subr.mxu0 0.0
        %1415 = vmatpush1.msra.mxu0 0.0
        %1416 = vmatprep.subr.mxu0 0.0
        %1417 = vmatpush1.msra.mxu0 0.0
        %1418 = vmatprep.subr.mxu0 0.0
        %1419 = vmatpush1.msra.mxu0 0.0
        %1420 = vmatprep.subr.mxu0 0.0
        %1421 = vmatpush1.msra.mxu0 0.0
        %1422 = vmatprep.subr.mxu0 0.0
        %1423 = vmatpush1.msra.mxu0 0.0
        %1424 = vmatprep.subr.mxu0 0.0
        %1425 = vmatpush1.msra.mxu0 0.0
        %1426 = vmatprep.subr.mxu0 0.0
        %1427 = vmatpush1.msra.mxu0 0.0
        %1428 = vmatprep.subr.mxu0 0.0
        %1429 = vmatpush1.msra.mxu0 0.0
        %1430 = vmatprep.subr.mxu0 0.0
        %1431 = vmatpush1.msra.mxu0 0.0
        %1432 = vmatprep.subr.mxu0 0.0
        %1433 = vmatpush1.msra.mxu0 0.0
        %1434 = vmatprep.subr.mxu0 0.0
        %1435 = vmatpush1.msra.mxu0 0.0
        %1436 = vmatprep.subr.mxu0 0.0
        %1437 = vmatpush1.msra.mxu0 0.0
        %1438 = vmatprep.subr.mxu0 0.0
        %1439 = vmatpush1.msra.mxu0 0.0
        %1440 = vmatprep.subr.mxu0 0.0
        %1441 = vmatpush1.msra.mxu0 0.0
        %1442 = vmatprep.mubr.f32.mxu0 0.0
        %1443 = vmatmul.mubr.f32.gmra.mrb[0].mxu0 %v1360
        %v1444 = vpop.f32.mrb[0].mxu0
        %v1445 = vadd.f32 0.0, %v1444
        %v1446 = vpop.f32.mrb[0].mxu0
        %1447 = vdwg.mxu0
        %1448 = vmatprep.subr.mxu0 0.0
        %1449 = vmatpush1.msra.mxu0 %v845
        %1450 = vmatprep.subr.mxu0 0.0
        %1451 = vmatpush1.msra.mxu0 %v846
        %1452 = vmatprep.subr.mxu0 0.0
        %1453 = vmatpush1.msra.mxu0 %v847
        %1454 = vmatprep.subr.mxu0 0.0
        %1455 = vmatpush1.msra.mxu0 %v848
        %1456 = vmatprep.subr.mxu0 0.0
        %1457 = vmatpush1.msra.mxu0 %v849
        %1458 = vmatprep.subr.mxu0 0.0
        %1459 = vmatpush1.msra.mxu0 %v850
        %1460 = vmatprep.subr.mxu0 0.0
        %1461 = vmatpush1.msra.mxu0 %v851
        %1462 = vmatprep.subr.mxu0 0.0
        %1463 = vmatpush1.msra.mxu0 %v852
        %1464 = vmatprep.subr.mxu0 0.0
        %1465 = vmatpush1.msra.mxu0 %v853
        %1466 = vmatprep.subr.mxu0 0.0
        %1467 = vmatpush1.msra.mxu0 %v854
        %1468 = vmatprep.subr.mxu0 0.0
        %1469 = vmatpush1.msra.mxu0 %v855
        %1470 = vmatprep.subr.mxu0 0.0
        %1471 = vmatpush1.msra.mxu0 %v856
        %1472 = vmatprep.subr.mxu0 0.0
        %1473 = vmatpush1.msra.mxu0 %v857
        %1474 = vmatprep.subr.mxu0 0.0
        %1475 = vmatpush1.msra.mxu0 %v858
        %1476 = vmatprep.subr.mxu0 0.0
        %1477 = vmatpush1.msra.mxu0 %v859
        %1478 = vmatprep.subr.mxu0 0.0
        %1479 = vmatpush1.msra.mxu0 %v860
        %1480 = vmatprep.subr.mxu0 0.0
        %1481 = vmatpush1.msra.mxu0 0.0
        %1482 = vmatprep.subr.mxu0 0.0
        %1483 = vmatpush1.msra.mxu0 0.0
        %1484 = vmatprep.subr.mxu0 0.0
        %1485 = vmatpush1.msra.mxu0 0.0
        %1486 = vmatprep.subr.mxu0 0.0
        %1487 = vmatpush1.msra.mxu0 0.0
        %1488 = vmatprep.subr.mxu0 0.0
        %1489 = vmatpush1.msra.mxu0 0.0
        %1490 = vmatprep.subr.mxu0 0.0
        %1491 = vmatpush1.msra.mxu0 0.0
        %1492 = vmatprep.subr.mxu0 0.0
        %1493 = vmatpush1.msra.mxu0 0.0
        %1494 = vmatprep.subr.mxu0 0.0
        %1495 = vmatpush1.msra.mxu0 0.0
        %1496 = vmatprep.subr.mxu0 0.0
        %1497 = vmatpush1.msra.mxu0 0.0
        %1498 = vmatprep.subr.mxu0 0.0
        %1499 = vmatpush1.msra.mxu0 0.0
        %1500 = vmatprep.subr.mxu0 0.0
        %1501 = vmatpush1.msra.mxu0 0.0
        %1502 = vmatprep.subr.mxu0 0.0
        %1503 = vmatpush1.msra.mxu0 0.0
        %1504 = vmatprep.subr.mxu0 0.0
        %1505 = vmatpush1.msra.mxu0 0.0
        %1506 = vmatprep.subr.mxu0 0.0
        %1507 = vmatpush1.msra.mxu0 0.0
        %1508 = vmatprep.subr.mxu0 0.0
        %1509 = vmatpush1.msra.mxu0 0.0
        %1510 = vmatprep.subr.mxu0 0.0
        %1511 = vmatpush1.msra.mxu0 0.0
        %1512 = vmatprep.mubr.f32.mxu0 0.0
        %1513 = vmatmul.mubr.f32.gmra.mrb[0].mxu0 %v844
        %v1514 = vpop.f32.mrb[0].mxu0
        %v1515 = vadd.f32 %v1445, %v1514
        %v1516 = vpop.f32.mrb[0].mxu0
        %1517 = vdwg.mxu0
        %v1518 = vld [vmem:[%s3] sm:$0x1]
        %v1520 = vlaneseq
        %v1521 = vshrl.u32 %v1520, 7
        %v1522 = vsub.s32 0, %v1521
        %v1523 = vrot.slane %v1518, %v1522
        %v1525 = vadd.f32 %v1515, %v1523
        %vm1526 = vcmask 523264
        %1527 = vst.msk [vmem:[%s205] sm:$0xff] %vm1526, %v1525
        %s1528 = sand.u32 %s116, 1
        %s1529 = scalar_lea.sflag [#allocation5], %s1528
        %s1530 = sand.u32 %s116, 1
        %s1531 = smul.addr %s1530, 8
        %s1532 = scalar_lea.vmem [#allocation6], %s1531
        // Predicated region
        $region41: #{tpu_custom_call.1} parent=35 // pred_check
          %p1533 = pneg %p126
        $region42: #{tpu_custom_call.1} parent=35 // pred_check_branch
          %1535 = sbr.rel (%p1533) target = $region44
        $region43: #{tpu_custom_call.1} parent=35 // pred_region
          %s1537 = ssub.s32 128, 128
          %1538 = vsyncadd %s1529, %s1537
          %s1539 = smul.addr %s19, 128
          %s1540 = scalar_lea.hbm %s4, %s1539
          %s1542 = sshll.u32 %s1532, 4
          %s1543 = int_to_ptr.vmem [resolvable:$true] %s1542
          %1545 = dma.vmem_to_hbm [thread:$0]  %s1543, 128, %s1540, %s1529
        $region44: #{tpu_custom_call.1} parent=35 // pred_fallthru
          _
      $region36: #{tpu_custom_call.1} parent=5 // pred_fallthru
        _
      %p1546 = scmp.le.s32.totalorder 2, %s14
      // Predicated region
      $region45: #{tpu_custom_call.1} parent=5 // pred_check
        %p1547 = pneg %p1546
      $region46: #{tpu_custom_call.1} parent=5 // pred_check_branch
        %1549 = sbr.rel (%p1547) target = $region48
      $region47: #{tpu_custom_call.1} parent=5 // pred_region
        %s1550 = ssub.s32 %s14, 2
        // Predicated region
        $region49: #{tpu_custom_call.1} parent=47 // pred_check
          %p1551 = pneg %p132
        $region50: #{tpu_custom_call.1} parent=47 // pred_check_branch
          %1553 = sbr.rel (%p1551) target = $region52
        $region51: #{tpu_custom_call.1} parent=47 // pred_region
          %s1554 = sand.u32 %s117, 1
          %s1555 = scalar_lea.sflag [#allocation5], %s1554
          %s1556 = sand.u32 %s117, 1
          %s1557 = smul.addr %s1556, 8
          %s1558 = scalar_lea.vmem [#allocation6], %s1557
          %1559 = dma.done %s1555, 128
        $region52: #{tpu_custom_call.1} parent=47 // pred_fallthru
          _
      $region48: #{tpu_custom_call.1} parent=5 // pred_fallthru
        _
    $region6: #{tpu_custom_call.1} parent=1 // loop_footer
      %s18 = sadd.s32 1, %s14
    $region7: #{tpu_custom_call.1} parent=1 // loop_footer_branch
      %13 = sbr.rel target = $region3
    $region8: #{tpu_custom_call.1} parent=1 // loop_exit
      _
    %1560 = vsyncpa [#allocation4], 1
    %s1561 = scalar_lea.sflag [#allocation4], 1
    %1562 = vsyncpa %s1561, 1
    %1563 = vsyncpa [#allocation5], 1
    %s1564 = scalar_lea.sflag [#allocation5], 1
    %1565 = vsyncpa %s1564, 1

</llo_original>
